<compile_context>
chip_gen: v5e
topology: v5e:2x2
jax: 0.10.0
libtpu: 0.0.40
codegen_flags: <defaults>
</compile_context>

<pallas_src>
from functools import partial

import jax
import jax.numpy as jnp
from jax.experimental import pallas as pl
from jax.experimental.pallas import tpu as pltpu


def bn_relu_conv_kernel(scale_ref, shift_ref, x_ref, w_ref, b_ref, o_ref, *, ksize, tile_h):
    """One (batch, row-tile) step.

    x_ref : (1, H+2p, W, Cin)  bf16  H-padded image of this batch element
    w_ref : (k*k*Cin, Cout)    bf16  im2col-ordered conv weights ((dy, dx, ci) -> co)
    o_ref : (1, tile_h*W, Cout) f32  output rows of this tile
    """
    r = pl.program_id(1)
    k = ksize
    p = k // 2
    Hp, W, Cin = x_ref.shape[1], x_ref.shape[2], x_ref.shape[3]
    H = Hp - 2 * p
    win_h = tile_h + 2 * p
    TR = tile_h * W

    # ---- load this tile's row window (leading-dim dynamic slice: cheap) --------------
    row0 = pl.multiple_of(r * tile_h, tile_h)
    xw = x_ref[0, pl.ds(row0, win_h), :, :].astype(jnp.float32)          # (win_h, W, Cin)

    # ---- BatchNorm affine (stats hoisted to wrapper) + ReLU, in f32 (v5e-safe) -------
    scale = scale_ref[...].reshape(1, 1, Cin)
    shift = shift_ref[...].reshape(1, 1, Cin)
    xn = jnp.maximum(xw * scale + shift, 0.0)
    # Rows that are SAME-padding halo were zero-padded in HBM *before* BN, so they must
    # be masked back to exactly zero after the affine + ReLU.
    g = row0 + jax.lax.broadcasted_iota(jnp.int32, (win_h, W, Cin), 0)   # global padded row
    xn = jnp.where((g >= p) & (g < p + H), xn, 0.0)

    # ---- column halo folded into the value: zero-pad W in registers (no scratch) -----
    zcol = jnp.zeros((win_h, p, Cin), jnp.float32)
    xp = jnp.concatenate([zcol, xn, zcol], axis=1)                       # (win_h, W+2p, Cin)

    # ---- im2col: one (TR, k*k*Cin) patch -> single MXU matmul ------------------------
    # One full-width slab per dy; dx taps are register slices of that slab.  Column order
    # (dy, dx, ci) matches the wrapper's weight layout.
    cols = []
    for dy in range(k):
        slab = xp[dy:dy + tile_h]                                        # (tile_h, W+2p, Cin)
        for dx in range(k):
            cols.append(slab[:, dx:dx + W, :].reshape(TR, Cin))
    patch = jnp.concatenate(cols, axis=-1).astype(jnp.bfloat16)          # (TR, k*k*Cin)

    acc = jnp.dot(patch, w_ref[...], preferred_element_type=jnp.float32)  # (TR, Cout) f32
    o_ref[0] = acc + b_ref[...]                                          # + conv bias


def _pick_tile_h(H, W, target_rows=256):
    """Largest divisor of H with tile_h*W <= target_rows and a sublane-friendly tile;
    falls back to the whole image (a full-extent block is always legal)."""
    cap = max(1, min(H, target_rows // max(1, W)))
    for t in range(cap, 0, -1):
        if H % t == 0 and (t * W) % 8 == 0:
            return t
    return H


def base_conv_block_forward(x_nchw, gamma, beta, conv_w, conv_b, *, eps=1e-5, tile_h=None):
    """x_nchw: (N, Cin, H, W) f32; conv_w: (Cout, Cin, k, k); returns (N, Cout, H, W) f32."""
    N, Cin, H, W = x_nchw.shape
    Cout, _, kh, kw = conv_w.shape
    assert kh == kw, "square kernel expected"
    k = kh
    p = k // 2
    Hp = H + 2 * p

    if tile_h is None:
        tile_h = _pick_tile_h(H, W)
    assert H % tile_h == 0
    n_rows = H // tile_h
    TR = tile_h * W
    # TODO(synk): W / Cout are not tiled on the grid; for W >> 256 or Cout >= 256 an extra
    # grid axis should be added so the accumulator stays <= ~32 vregs.

    x = x_nchw.astype(jnp.float32)

    # ---- hoisted BatchNorm2d training-mode statistics (full batch, biased variance) ---
    mean = jnp.mean(x, axis=(0, 2, 3))
    var = jnp.var(x, axis=(0, 2, 3))                         # ddof=0, like PyTorch BN
    inv = jax.lax.rsqrt(var + eps)
    scale = (gamma.astype(jnp.float32) * inv).reshape(1, Cin)
    shift = (beta.astype(jnp.float32) - mean * gamma.astype(jnp.float32) * inv).reshape(1, Cin)
    # TODO(synk): running_mean/running_var momentum updates (training buffer state) are
    # not produced; only the normalized forward output is.

    # ---- NHWC, zero-pad H by p rows (row halo), bf16 (halves HBM read & resident VMEM) -
    x_nhwc = jnp.transpose(x, (0, 2, 3, 1))
    x_pad = jnp.pad(x_nhwc, ((0, 0), (p, p), (0, 0), (0, 0))).astype(jnp.bfloat16)

    # ---- conv weights in im2col order: (Cout, Cin, k, k) -> ((dy, dx, ci), co) ---------
    w_mat = jnp.transpose(conv_w.astype(jnp.float32), (2, 3, 1, 0))
    w_mat = w_mat.reshape(k * k * Cin, Cout).astype(jnp.bfloat16)
    bias = conv_b.astype(jnp.float32).reshape(1, Cout)

    # ---- per-generation VMEM limit + advisory cost estimate ----------------------------
    try:
        vmem_limit = int(pltpu.get_tpu_info().vmem_capacity_bytes * 3 // 4)  # ~96M v5e/v6e, ~48M v7x
    except Exception:
        vmem_limit = 48 * 1024 * 1024
    cost = pl.CostEstimate(
        flops=2 * N * H * W * k * k * Cin * Cout + 6 * N * H * W * Cin,
        transcendentals=0,
        bytes_accessed=int(x_pad.size) * 2 + N * H * W * Cout * 4
                       + int(w_mat.size) * 2 + (2 * Cin + Cout) * 4,
    )

    kernel = partial(bn_relu_conv_kernel, ksize=k, tile_h=tile_h)
    out = pl.pallas_call(
        kernel,
        out_shape=jax.ShapeDtypeStruct((N, H * W, Cout), jnp.float32),
        grid_spec=pltpu.PrefetchScalarGridSpec(
            num_scalar_prefetch=0,
            grid=(N, n_rows),
            in_specs=[
                pl.BlockSpec((1, Cin), lambda n, r: (0, 0)),                # BN scale
                pl.BlockSpec((1, Cin), lambda n, r: (0, 0)),                # BN shift
                pl.BlockSpec((1, Hp, W, Cin), lambda n, r: (n, 0, 0, 0)),   # x (per image)
                pl.BlockSpec((k * k * Cin, Cout), lambda n, r: (0, 0)),     # im2col weights
                pl.BlockSpec((1, Cout), lambda n, r: (0, 0)),               # conv bias
            ],
            out_specs=pl.BlockSpec((1, TR, Cout), lambda n, r: (n, r, 0)),
        ),
        compiler_params=pltpu.CompilerParams(
            dimension_semantics=("parallel", "parallel"),
            vmem_limit_bytes=vmem_limit,
        ),
        cost_estimate=cost,
    )(scale, shift, x_pad, w_mat, bias)

    out = out.reshape(N, H, W, Cout)
    return jnp.transpose(out, (0, 3, 1, 2))    # back to NCHW, f32 (module-equivalent)


def reference_forward(x, gamma, beta, conv_w, conv_b, eps=1e-5):
    """Plain-JAX f32 reference of the PyTorch module (NCHW)."""
    mean = jnp.mean(x, axis=(0, 2, 3), keepdims=True)
    var = jnp.mean((x - mean) ** 2, axis=(0, 2, 3), keepdims=True)
    xn = (x - mean) / jnp.sqrt(var + eps)
    xn = xn * gamma.reshape(1, -1, 1, 1) + beta.reshape(1, -1, 1, 1)
    xn = jnp.maximum(xn, 0.0)
    y = jax.lax.conv_general_dilated(xn, conv_w, window_strides=(1, 1), padding="SAME",
                                     dimension_numbers=("NCHW", "OIHW", "NCHW"))
    return y + conv_b.reshape(1, -1, 1, 1)


if __name__ == "__main__":
    N, Cin, H, W = 2, 4, 16, 16      # inplanes = 4
    Cout, ksize = 8, 3               # planes = 8, kernel_size = 3

    key = jax.random.PRNGKey(0)
    k1, k2, k3, k4, k5 = jax.random.split(key, 5)

    x = jax.random.normal(k1, (N, Cin, H, W), jnp.float32)
    gamma = 1.0 + 0.1 * jax.random.normal(k2, (Cin,), jnp.float32)
    beta = 0.1 * jax.random.normal(k3, (Cin,), jnp.float32)
    fan_in = Cin * ksize * ksize
    bound = 1.0 / (fan_in ** 0.5)
    conv_w = jax.random.uniform(k4, (Cout, Cin, ksize, ksize), jnp.float32, -bound, bound)
    conv_b = jax.random.uniform(k5, (Cout,), jnp.float32, -bound, bound)

    out = base_conv_block_forward(x, gamma, beta, conv_w, conv_b)
    out = jax.block_until_ready(out)

    ref = reference_forward(x, gamma, beta, conv_w, conv_b)
    assert out.shape == (N, Cout, H, W), out.shape
    # Input, activations and weights are rounded to bf16 for the MXU (f32 accumulation),
    # so compare at bf16-level tolerance against the f32 reference.
    max_err = float(jnp.max(jnp.abs(out - ref)))
    assert jnp.allclose(out, ref, atol=2e-2, rtol=2e-2), max_err
    print("KERNEL_OK")
</pallas_src>

<mosaic_0001>
module attributes {stable_mosaic.version = 11 : i64} {
  func.func @bn_relu_conv_kernel(%arg0: i32, %arg1: i32, %arg2: memref<1x4xf32, #tpu.memory_space<vmem>>, %arg3: memref<1x4xf32, #tpu.memory_space<vmem>>, %arg4: memref<1x18x16x4xbf16, #tpu.memory_space<vmem>>, %arg5: memref<36x8xbf16, #tpu.memory_space<vmem>>, %arg6: memref<1x8xf32, #tpu.memory_space<vmem>>, %arg7: memref<1x256x8xf32, #tpu.memory_space<vmem>>) attributes {dimension_semantics = [#tpu.dimension_semantics<parallel>, #tpu.dimension_semantics<parallel>], iteration_bounds = array<i64: 2, 1>, scalar_prefetch = 0 : i64, scratch_operands = 0 : i64, tpu.core_type = #tpu.core_type<tc>, window_params = [{pipeline_mode = #tpu.pipeline_mode<synchronous>, transform_indices = @transform_0, window_bounds = array<i64: 1, 4>}, {pipeline_mode = #tpu.pipeline_mode<synchronous>, transform_indices = @transform_1, window_bounds = array<i64: 1, 4>}, {transform_indices = @transform_2, window_bounds = array<i64: 1, 18, 16, 4>}, {pipeline_mode = #tpu.pipeline_mode<synchronous>, transform_indices = @transform_3, window_bounds = array<i64: 36, 8>}, {pipeline_mode = #tpu.pipeline_mode<synchronous>, transform_indices = @transform_4, window_bounds = array<i64: 1, 8>}, {transform_indices = @transform_5, window_bounds = array<i64: 1, 256, 8>}]} {
    %c16_i32 = arith.constant 16 : i32
    %0 = arith.muli %arg1, %c16_i32 : i32
    %1 = tpu.assume_multiple %0, 16 : i32
    %c0 = arith.constant 0 : index
    %2 = arith.index_cast %1 : i32 to index
    %c0_0 = arith.constant 0 : index
    %c0_1 = arith.constant 0 : index
    %3 = vector.load %arg4[%c0, %2, %c0_0, %c0_1] : memref<1x18x16x4xbf16, #tpu.memory_space<vmem>>, vector<1x18x16x4xbf16>
    %4 = vector.shape_cast %3 : vector<1x18x16x4xbf16> to vector<18x16x4xbf16>
    %5 = arith.extf %4 : vector<18x16x4xbf16> to vector<18x16x4xf32>
    %c0_2 = arith.constant 0 : index
    %c0_3 = arith.constant 0 : index
    %6 = vector.load %arg2[%c0_2, %c0_3] : memref<1x4xf32, #tpu.memory_space<vmem>>, vector<1x4xf32>
    %7 = vector.shape_cast %6 : vector<1x4xf32> to vector<1x1x4xf32>
    %c0_4 = arith.constant 0 : index
    %c0_5 = arith.constant 0 : index
    %8 = vector.load %arg3[%c0_4, %c0_5] : memref<1x4xf32, #tpu.memory_space<vmem>>, vector<1x4xf32>
    %9 = vector.shape_cast %8 : vector<1x4xf32> to vector<1x1x4xf32>
    %10 = vector.broadcast %7 : vector<1x1x4xf32> to vector<18x16x4xf32>
    %11 = arith.mulf %5, %10 : vector<18x16x4xf32>
    %12 = vector.broadcast %9 : vector<1x1x4xf32> to vector<18x16x4xf32>
    %13 = arith.addf %11, %12 : vector<18x16x4xf32>
    %cst = arith.constant 0.000000e+00 : f32
    %14 = vector.broadcast %cst : f32 to vector<18x16x4xf32>
    %15 = arith.maximumf %13, %14 : vector<18x16x4xf32>
    %16 = tpu.iota {dimensions = array<i32: 0>} : vector<18x16x4xi32>
    %17 = vector.broadcast %1 : i32 to vector<18x16x4xi32>
    %18 = arith.addi %17, %16 : vector<18x16x4xi32>
    %c1_i32 = arith.constant 1 : i32
    %19 = vector.broadcast %c1_i32 : i32 to vector<18x16x4xi32>
    %20 = arith.cmpi sge, %18, %19 : vector<18x16x4xi32>
    %c17_i32 = arith.constant 17 : i32
    %21 = vector.broadcast %c17_i32 : i32 to vector<18x16x4xi32>
    %22 = arith.cmpi slt, %18, %21 : vector<18x16x4xi32>
    %23 = arith.andi %20, %22 : vector<18x16x4xi1>
    %cst_6 = arith.constant 0.000000e+00 : f32
    %24 = vector.broadcast %cst_6 : f32 to vector<18x16x4xf32>
    %25 = arith.select %23, %15, %24 : vector<18x16x4xi1>, vector<18x16x4xf32>
    %cst_7 = arith.constant 0.000000e+00 : f32
    %26 = vector.broadcast %cst_7 : f32 to vector<18x1x4xf32>
    %27 = tpu.concatenate %26, %25, %26 in 1 : vector<18x1x4xf32>, vector<18x16x4xf32>, vector<18x1x4xf32> -> vector<18x18x4xf32>
    %28 = vector.extract_strided_slice %27 {offsets = [0, 0, 0], sizes = [16, 18, 4], strides = [1, 1, 1]} : vector<18x18x4xf32> to vector<16x18x4xf32>
    %29 = vector.extract_strided_slice %28 {offsets = [0, 0, 0], sizes = [16, 16, 4], strides = [1, 1, 1]} : vector<16x18x4xf32> to vector<16x16x4xf32>
    %30 = vector.shape_cast %29 : vector<16x16x4xf32> to vector<256x4xf32>
    %31 = vector.extract_strided_slice %28 {offsets = [0, 1, 0], sizes = [16, 16, 4], strides = [1, 1, 1]} : vector<16x18x4xf32> to vector<16x16x4xf32>
    %32 = vector.shape_cast %31 : vector<16x16x4xf32> to vector<256x4xf32>
    %33 = vector.extract_strided_slice %28 {offsets = [0, 2, 0], sizes = [16, 16, 4], strides = [1, 1, 1]} : vector<16x18x4xf32> to vector<16x16x4xf32>
    %34 = vector.shape_cast %33 : vector<16x16x4xf32> to vector<256x4xf32>
    %35 = vector.extract_strided_slice %27 {offsets = [1, 0, 0], sizes = [16, 18, 4], strides = [1, 1, 1]} : vector<18x18x4xf32> to vector<16x18x4xf32>
    %36 = vector.extract_strided_slice %35 {offsets = [0, 0, 0], sizes = [16, 16, 4], strides = [1, 1, 1]} : vector<16x18x4xf32> to vector<16x16x4xf32>
    %37 = vector.shape_cast %36 : vector<16x16x4xf32> to vector<256x4xf32>
    %38 = vector.extract_strided_slice %35 {offsets = [0, 1, 0], sizes = [16, 16, 4], strides = [1, 1, 1]} : vector<16x18x4xf32> to vector<16x16x4xf32>
    %39 = vector.shape_cast %38 : vector<16x16x4xf32> to vector<256x4xf32>
    %40 = vector.extract_strided_slice %35 {offsets = [0, 2, 0], sizes = [16, 16, 4], strides = [1, 1, 1]} : vector<16x18x4xf32> to vector<16x16x4xf32>
    %41 = vector.shape_cast %40 : vector<16x16x4xf32> to vector<256x4xf32>
    %42 = vector.extract_strided_slice %27 {offsets = [2, 0, 0], sizes = [16, 18, 4], strides = [1, 1, 1]} : vector<18x18x4xf32> to vector<16x18x4xf32>
    %43 = vector.extract_strided_slice %42 {offsets = [0, 0, 0], sizes = [16, 16, 4], strides = [1, 1, 1]} : vector<16x18x4xf32> to vector<16x16x4xf32>
    %44 = vector.shape_cast %43 : vector<16x16x4xf32> to vector<256x4xf32>
    %45 = vector.extract_strided_slice %42 {offsets = [0, 1, 0], sizes = [16, 16, 4], strides = [1, 1, 1]} : vector<16x18x4xf32> to vector<16x16x4xf32>
    %46 = vector.shape_cast %45 : vector<16x16x4xf32> to vector<256x4xf32>
    %47 = vector.extract_strided_slice %42 {offsets = [0, 2, 0], sizes = [16, 16, 4], strides = [1, 1, 1]} : vector<16x18x4xf32> to vector<16x16x4xf32>
    %48 = vector.shape_cast %47 : vector<16x16x4xf32> to vector<256x4xf32>
    %49 = tpu.concatenate %30, %32, %34, %37, %39, %41, %44, %46, %48 in 1 : vector<256x4xf32>, vector<256x4xf32>, vector<256x4xf32>, vector<256x4xf32>, vector<256x4xf32>, vector<256x4xf32>, vector<256x4xf32>, vector<256x4xf32>, vector<256x4xf32> -> vector<256x36xf32>
    %50 = arith.truncf %49 : vector<256x36xf32> to vector<256x36xbf16>
    %c0_8 = arith.constant 0 : index
    %c0_9 = arith.constant 0 : index
    %51 = vector.load %arg5[%c0_8, %c0_9] : memref<36x8xbf16, #tpu.memory_space<vmem>>, vector<36x8xbf16>
    %cst_10 = arith.constant dense<0.000000e+00> : vector<256x8xf32>
    %52 = tpu.matmul %50, %51, %cst_10 {dimension_numbers = #tpu.dot_dimension_numbers<[1], [0], [0], [1], [0, 0, 1, 1], [], []>} : vector<256x36xbf16>, vector<36x8xbf16>, vector<256x8xf32> -> vector<256x8xf32>
    %c0_11 = arith.constant 0 : index
    %c0_12 = arith.constant 0 : index
    %53 = vector.load %arg6[%c0_11, %c0_12] : memref<1x8xf32, #tpu.memory_space<vmem>>, vector<1x8xf32>
    %54 = vector.broadcast %53 : vector<1x8xf32> to vector<256x8xf32>
    %55 = arith.addf %52, %54 : vector<256x8xf32>
    %c0_13 = arith.constant 0 : index
    %c0_14 = arith.constant 0 : index
    %c0_15 = arith.constant 0 : index
    %56 = vector.load %arg7[%c0_13, %c0_14, %c0_15] : memref<1x256x8xf32, #tpu.memory_space<vmem>>, vector<1x256x8xf32>
    %57 = vector.shape_cast %56 : vector<1x256x8xf32> to vector<256x8xf32>
    %58 = vector.shape_cast %55 : vector<256x8xf32> to vector<1x256x8xf32>
    tpu.vector_store %arg7[%c0_13, %c0_14, %c0_15], %58 {strides = array<i32>} : memref<1x256x8xf32, #tpu.memory_space<vmem>>, vector<1x256x8xf32>,
    return
  }
  func.func @transform_0(%arg0: i32, %arg1: i32) -> (i32, i32) {
    %c0_i32 = arith.constant 0 : i32
    %c0_i32_0 = arith.constant 0 : i32
    %c0_i32_1 = arith.constant 0 : i32
    return %c0_i32, %c0_i32_0 : i32, i32
  }
  func.func @transform_1(%arg0: i32, %arg1: i32) -> (i32, i32) {
    %c0_i32 = arith.constant 0 : i32
    %c0_i32_0 = arith.constant 0 : i32
    %c0_i32_1 = arith.constant 0 : i32
    return %c0_i32, %c0_i32_0 : i32, i32
  }
  func.func @transform_2(%arg0: i32, %arg1: i32) -> (i32, i32, i32, i32) {
    %c0_i32 = arith.constant 0 : i32
    %c0_i32_0 = arith.constant 0 : i32
    %c0_i32_1 = arith.constant 0 : i32
    %c0_i32_2 = arith.constant 0 : i32
    return %arg0, %c0_i32, %c0_i32_0, %c0_i32_1 : i32, i32, i32, i32
  }
  func.func @transform_3(%arg0: i32, %arg1: i32) -> (i32, i32) {
    %c0_i32 = arith.constant 0 : i32
    %c0_i32_0 = arith.constant 0 : i32
    %c0_i32_1 = arith.constant 0 : i32
    return %c0_i32, %c0_i32_0 : i32, i32
  }
  func.func @transform_4(%arg0: i32, %arg1: i32) -> (i32, i32) {
    %c0_i32 = arith.constant 0 : i32
    %c0_i32_0 = arith.constant 0 : i32
    %c0_i32_1 = arith.constant 0 : i32
    return %c0_i32, %c0_i32_0 : i32, i32
  }
  func.func @transform_5(%arg0: i32, %arg1: i32) -> (i32, i32, i32) {
    %c0_i32 = arith.constant 0 : i32
    %c0_i32_0 = arith.constant 0 : i32
    return %arg0, %arg1, %c0_i32 : i32, i32, i32
  }
}

</mosaic_0001>

<llo_original>
// kernel: tpu_custom_call.1
$region0: #{tpu_custom_call.1}
  #allocation0 [shape = 'u32[]', space=smem, size = 0x4, offset = 0x4, fixed_abs, tag = 'smem constant byte address 0x4 - core index']
  #allocation1 [shape = 'u32[72,128]{1,0:T(1,128)}', space=vmem, size = 0x9000, scoped, tag = 'internal scratch']
  %s0 = inlined_call_operand.vmem [shape: f32[1,4], index: 0, kind: input, shape index: {}]
  %s1 = inlined_call_operand.vmem [shape: f32[1,4], index: 1, kind: input, shape index: {}]
  %s2 = inlined_call_operand.vmem [shape: bf16[2,18,16,4], index: 2, kind: input, shape index: {}]
  %s3 = inlined_call_operand.vmem [shape: bf16[36,8], index: 3, kind: input, shape index: {}]
  %s4 = inlined_call_operand.vmem [shape: f32[1,8], index: 4, kind: input, shape index: {}]
  %s5 = inlined_call_operand.vmem [shape: f32[2,256,8], index: 5, kind: output, shape index: {}]
  %s6 = sld [smem:[#allocation0]]
  $region53: #{tpu_custom_call.1} parent=0
    _
  %s8 = ssub.s32 1, %s6
  %s9 = scalar_select 0, %s8, %s6
  loop: start=0, step=1, limit=4
  $region2: #{tpu_custom_call.1} parent=0 // loop_pre_header
    _
  $region3: #{tpu_custom_call.1} parent=0 // loop_header
    %s11 = sphi 0, %s15
    %p12 = scmp.ge.s32.totalorder %s11, 4
    %s18 = sphi 0, %s30
    %s19 = sphi 0, %s26
    %s20 = sphi 0, %s18
    %s21 = sphi 0, %s19
    %s22 = sphi 0, %s20
    %s23 = sphi 0, %s21
    %s31 = sphi 0, %s31
    %s33 = sphi 0, %s31
    %s34 = sphi 0, %s33
    %s48 = sphi 0, %s34
    %s52 = sphi 0, %s52
    %s54 = sphi 0, %s52
    %s55 = sphi 0, %s54
    %s69 = sphi 0, %s55
    %s75 = sphi 0, %s77
    %s78 = sphi 0, %s75
    %s79 = sphi 0, %s78
    %s95 = sphi 0, %s79
    %s99 = sphi 0, %s99
    %s101 = sphi 0, %s99
    %s102 = sphi 0, %s101
    %s116 = sphi 0, %s102
    %s120 = sphi 0, %s120
    %s122 = sphi 0, %s120
    %s123 = sphi 0, %s122
    %s137 = sphi 0, %s123
    %s145 = sphi 0, %s147
    %s148 = sphi 0, %s145
    %s149 = sphi 0, %s148
    %s165 = sphi 0, %s149
  $region4: #{tpu_custom_call.1} parent=0 // loop_header_branch
    %14 = sbr.rel (%p12) target = $region8
  $region5: #{tpu_custom_call.1} parent=0 // loop_body
    %s16 = ssub.s32 %s11, 1
    %s17 = ssub.s32 %s11, 2
    %s24 = sadd.s32 1, %s19
    %p25 = scmp.ge.s32.totalorder %s24, 1
    %s26 = scalar_select %p25, 0, %s24
    %s27 = sadd.s32 1, %s18
    %s28 = scalar_select %p25, %s27, %s18
    %p29 = scmp.ge.s32.totalorder %s28, 2
    %s30 = scalar_select %p29, 0, %s28
    %s32 = sadd.s32 %s31, 1
    %p35 = scmp.eq.s32.totalorder %s11, 1
    %p36 = scmp.ne.s32.totalorder %s31, %s33
    %p37 = scmp.eq.s32.totalorder %s11, 0
    %p38 = por %p36, %p37
    %p39 = scmp.ne.s32.totalorder %s31, %s33
    %p40 = scmp.eq.s32.totalorder %s16, 1
    %p41 = por %p39, %p40
    %p42 = scmp.ne.s32.totalorder %s33, %s34
    %p43 = scmp.eq.s32.totalorder %s16, 0
    %p44 = por %p42, %p43
    %p45 = scmp.ne.s32.totalorder %s33, %s34
    %p46 = scmp.eq.s32.totalorder %s17, 1
    %p47 = por %p45, %p46
    %p49 = scmp.ne.s32.totalorder %s34, %s48
    %p50 = scmp.eq.s32.totalorder %s17, 0
    %p51 = por %p49, %p50
    %s53 = sadd.s32 %s52, 1
    %p56 = scmp.eq.s32.totalorder %s11, 1
    %p57 = scmp.ne.s32.totalorder %s52, %s54
    %p58 = scmp.eq.s32.totalorder %s11, 0
    %p59 = por %p57, %p58
    %p60 = scmp.ne.s32.totalorder %s52, %s54
    %p61 = scmp.eq.s32.totalorder %s16, 1
    %p62 = por %p60, %p61
    %p63 = scmp.ne.s32.totalorder %s54, %s55
    %p64 = scmp.eq.s32.totalorder %s16, 0
    %p65 = por %p63, %p64
    %p66 = scmp.ne.s32.totalorder %s54, %s55
    %p67 = scmp.eq.s32.totalorder %s17, 1
    %p68 = por %p66, %p67
    %p70 = scmp.ne.s32.totalorder %s55, %s69
    %p71 = scmp.eq.s32.totalorder %s17, 0
    %p72 = por %p70, %p71
    %s73 = ssub.s32 %s18, %s30
    %p74 = scmp.eq.s32.totalorder %s73, 0
    %s76 = sadd.s32 %s75, 1
    %s77 = scalar_select %p74, %s75, %s76
    %p80 = pneg %p74
    %p81 = scmp.eq.s32.totalorder %s11, 1
    %p82 = por %p80, %p81
    %p83 = scmp.ne.s32.totalorder %s75, %s78
    %p84 = scmp.eq.s32.totalorder %s11, 0
    %p85 = por %p83, %p84
    %p86 = scmp.ne.s32.totalorder %s75, %s78
    %p87 = scmp.eq.s32.totalorder %s16, 1
    %p88 = por %p86, %p87
    %p89 = scmp.ne.s32.totalorder %s78, %s79
    %p90 = scmp.eq.s32.totalorder %s16, 0
    %p91 = por %p89, %p90
    %p92 = scmp.ne.s32.totalorder %s78, %s79
    %p93 = scmp.eq.s32.totalorder %s17, 1
    %p94 = por %p92, %p93
    %p96 = scmp.ne.s32.totalorder %s79, %s95
    %p97 = scmp.eq.s32.totalorder %s17, 0
    %p98 = por %p96, %p97
    %s100 = sadd.s32 %s99, 1
    %p103 = scmp.eq.s32.totalorder %s11, 1
    %p104 = scmp.ne.s32.totalorder %s99, %s101
    %p105 = scmp.eq.s32.totalorder %s11, 0
    %p106 = por %p104, %p105
    %p107 = scmp.ne.s32.totalorder %s99, %s101
    %p108 = scmp.eq.s32.totalorder %s16, 1
    %p109 = por %p107, %p108
    %p110 = scmp.ne.s32.totalorder %s101, %s102
    %p111 = scmp.eq.s32.totalorder %s16, 0
    %p112 = por %p110, %p111
    %p113 = scmp.ne.s32.totalorder %s101, %s102
    %p114 = scmp.eq.s32.totalorder %s17, 1
    %p115 = por %p113, %p114
    %p117 = scmp.ne.s32.totalorder %s102, %s116
    %p118 = scmp.eq.s32.totalorder %s17, 0
    %p119 = por %p117, %p118
    %s121 = sadd.s32 %s120, 1
    %p124 = scmp.eq.s32.totalorder %s11, 1
    %p125 = scmp.ne.s32.totalorder %s120, %s122
    %p126 = scmp.eq.s32.totalorder %s11, 0
    %p127 = por %p125, %p126
    %p128 = scmp.ne.s32.totalorder %s120, %s122
    %p129 = scmp.eq.s32.totalorder %s16, 1
    %p130 = por %p128, %p129
    %p131 = scmp.ne.s32.totalorder %s122, %s123
    %p132 = scmp.eq.s32.totalorder %s16, 0
    %p133 = por %p131, %p132
    %p134 = scmp.ne.s32.totalorder %s122, %s123
    %p135 = scmp.eq.s32.totalorder %s17, 1
    %p136 = por %p134, %p135
    %p138 = scmp.ne.s32.totalorder %s123, %s137
    %p139 = scmp.eq.s32.totalorder %s17, 0
    %p140 = por %p138, %p139
    %s141 = ssub.s32 %s18, %s30
    %s142 = ssub.s32 %s19, %s26
    %s143 = sor.u32 %s141, %s142
    %p144 = scmp.eq.s32.totalorder %s143, 0
    %s146 = sadd.s32 %s145, 1
    %s147 = scalar_select %p144, %s145, %s146
    %p150 = pneg %p144
    %p151 = scmp.eq.s32.totalorder %s11, 1
    %p152 = por %p150, %p151
    %p153 = scmp.ne.s32.totalorder %s145, %s148
    %p154 = scmp.eq.s32.totalorder %s11, 0
    %p155 = por %p153, %p154
    %p156 = scmp.ne.s32.totalorder %s145, %s148
    %p157 = scmp.eq.s32.totalorder %s16, 1
    %p158 = por %p156, %p157
    %p159 = scmp.ne.s32.totalorder %s148, %s149
    %p160 = scmp.eq.s32.totalorder %s16, 0
    %p161 = por %p159, %p160
    %p162 = scmp.ne.s32.totalorder %s148, %s149
    %p163 = scmp.eq.s32.totalorder %s17, 1
    %p164 = por %p162, %p163
    %p166 = scmp.ne.s32.totalorder %s149, %s165
    %p167 = scmp.eq.s32.totalorder %s17, 0
    %p168 = por %p166, %p167
    %p169 = scmp.le.s32.totalorder 1, %s11
    %p170 = scmp.lt.s32.totalorder %s11, 3
    %p171 = pnand %p169, %p170
    %p172 = pneg %p171
    // Predicated region
    $region9: #{tpu_custom_call.1} parent=5 // pred_check
      _
    $region10: #{tpu_custom_call.1} parent=5 // pred_check_branch
      %174 = sbr.rel (%p171) target = $region12
    $region11: #{tpu_custom_call.1} parent=5 // pred_region
      %s175 = ssub.s32 %s11, 1
      // Predicated region
      $region13: #{tpu_custom_call.1} parent=11 // pred_check
        %p176 = pneg %p44
      $region14: #{tpu_custom_call.1} parent=11 // pred_check_branch
        %178 = sbr.rel (%p176) target = $region16
      $region15: #{tpu_custom_call.1} parent=11 // pred_region
        _
      $region16: #{tpu_custom_call.1} parent=11 // pred_fallthru
        _
      // Predicated region
      $region17: #{tpu_custom_call.1} parent=11 // pred_check
        %p179 = pneg %p65
      $region18: #{tpu_custom_call.1} parent=11 // pred_check_branch
        %181 = sbr.rel (%p179) target = $region20
      $region19: #{tpu_custom_call.1} parent=11 // pred_region
        _
      $region20: #{tpu_custom_call.1} parent=11 // pred_fallthru
        _
      // Predicated region
      $region21: #{tpu_custom_call.1} parent=11 // pred_check
        %p182 = pneg %p112
      $region22: #{tpu_custom_call.1} parent=11 // pred_check_branch
        %184 = sbr.rel (%p182) target = $region24
      $region23: #{tpu_custom_call.1} parent=11 // pred_region
        _
      $region24: #{tpu_custom_call.1} parent=11 // pred_fallthru
        _
      // Predicated region
      $region25: #{tpu_custom_call.1} parent=11 // pred_check
        %p185 = pneg %p133
      $region26: #{tpu_custom_call.1} parent=11 // pred_check_branch
        %187 = sbr.rel (%p185) target = $region28
      $region27: #{tpu_custom_call.1} parent=11 // pred_region
        _
      $region28: #{tpu_custom_call.1} parent=11 // pred_fallthru
        _
    $region12: #{tpu_custom_call.1} parent=5 // pred_fallthru
      _
    %p188 = scmp.lt.s32.totalorder %s11, 2
    // Predicated region
    $region29: #{tpu_custom_call.1} parent=5 // pred_check
      %p189 = pneg %p188
    $region30: #{tpu_custom_call.1} parent=5 // pred_check_branch
      %191 = sbr.rel (%p189) target = $region32
    $region31: #{tpu_custom_call.1} parent=5 // pred_region
      // Predicated region
      $region33: #{tpu_custom_call.1} parent=31 // pred_check
        %p192 = pneg %p85
      $region34: #{tpu_custom_call.1} parent=31 // pred_check_branch
        %194 = sbr.rel (%p192) target = $region36
      $region35: #{tpu_custom_call.1} parent=31 // pred_region
        %p195 = scmp.lt.s32.totalorder %s18, 1
        %s196 = scalar_select %p195, %s18, 1
        %s197 = smul.addr %s196, 36
        %s198 = smul.addr %s197, 4
        %s199 = scalar_lea.vmem %s2, %s198
      $region36: #{tpu_custom_call.1} parent=31 // pred_fallthru
        _
    $region32: #{tpu_custom_call.1} parent=5 // pred_fallthru
      _
    %p200 = scmp.le.s32.totalorder 1, %s11
    %p201 = scmp.lt.s32.totalorder %s11, 3
    %p202 = pnand %p200, %p201
    %p203 = pneg %p202
    // Predicated region
    $region37: #{tpu_custom_call.1} parent=5 // pred_check
      _
    $region38: #{tpu_custom_call.1} parent=5 // pred_check_branch
      %205 = sbr.rel (%p202) target = $region40
    $region39: #{tpu_custom_call.1} parent=5 // pred_region
      %s206 = ssub.s32 %s11, 1
      %p207 = pneg %p44
      %p208 = pneg %p41
      %p209 = pneg %p65
      %p210 = pneg %p62
      %p211 = scmp.lt.s32.totalorder %s20, 1
      %s212 = scalar_select %p211, %s20, 1
      %s213 = smul.addr %s212, 36
      %s214 = smul.addr %s213, 4
      %s215 = scalar_lea.vmem %s2, %s214
      %p216 = pneg %p91
      %p217 = pneg %p88
      %p218 = pneg %p112
      %p219 = pneg %p109
      %p220 = pneg %p133
      %p221 = pneg %p130
      %p222 = pneg %p161
      %p223 = pneg %p158
      %s224 = smul.u32 32, %s21
      %p225 = scmp.lt.s32.totalorder %s20, 1
      %s226 = scalar_select %p225, %s20, 1
      %p227 = scmp.lt.s32.totalorder %s224, 31
      %s228 = scalar_select %p227, %s224, 31
      %s229 = smul.addr %s226, 32
      %s230 = sadd.s32 %s228, %s229
      %s231 = smul.addr %s230, 8
      %s232 = scalar_lea.vmem %s5, %s231
      %p233 = scmp.lt.s32.totalorder %s20, 1
      %s234 = scalar_select %p233, %s20, 1
      %s235 = smul.addr %s234, 36
      %s236 = smul.addr %s235, 4
      %s237 = scalar_lea.vmem %s2, %s236
      %s238 = smul.u32 32, %s21
      %p239 = scmp.lt.s32.totalorder %s20, 1
      %s240 = scalar_select %p239, %s20, 1
      %p241 = scmp.lt.s32.totalorder %s238, 31
      %s242 = scalar_select %p241, %s238, 31
      %s243 = smul.addr %s240, 32
      %s244 = sadd.s32 %s242, %s243
      %s245 = smul.addr %s244, 8
      %s246 = scalar_lea.vmem %s5, %s245
      %s247 = smul.u32 32, %s21
      %s249 = smul.u32 %s21, 16
      %s250 = smul.u32 %s249, 2
      %s251 = smul.addr %s250, 4
      %s252 = scalar_lea.vmem %s237, %s251
      %v253 = vld [vmem:[%s252] sm:$0xf]
      %v254 = vld [vmem:[%s252 + $0x4] sm:$0xf]
      %v255 = vld [vmem:[%s252 + $0x8] sm:$0xf]
      %v256 = vld [vmem:[%s252 + $0xc] sm:$0xf]
      %v257 = vld [vmem:[%s252 + $0x10] sm:$0xf]
      %v258 = vld [vmem:[%s252 + $0x14] sm:$0xf]
      %v259 = vld [vmem:[%s252 + $0x18] sm:$0xf]
      %v260 = vld [vmem:[%s252 + $0x1c] sm:$0xf]
      %v261 = vld [vmem:[%s252 + $0x20] sm:$0xf]
      %v262 = vld [vmem:[%s252 + $0x24] sm:$0xf]
      %v263 = vld [vmem:[%s252 + $0x28] sm:$0xf]
      %v264 = vld [vmem:[%s252 + $0x2c] sm:$0xf]
      %v265 = vld [vmem:[%s252 + $0x30] sm:$0xf]
      %v266 = vld [vmem:[%s252 + $0x34] sm:$0xf]
      %v267 = vld [vmem:[%s252 + $0x38] sm:$0xf]
      %v268 = vld [vmem:[%s252 + $0x3c] sm:$0xf]
      %v269 = vld [vmem:[%s252 + $0x40] sm:$0xf]
      %v270 = vld [vmem:[%s252 + $0x44] sm:$0xf]
      %v271 = vld [vmem:[%s252 + $0x48] sm:$0xf]
      %v272 = vld [vmem:[%s252 + $0x4c] sm:$0xf]
      %v273 = vld [vmem:[%s252 + $0x50] sm:$0xf]
      %v274 = vld [vmem:[%s252 + $0x54] sm:$0xf]
      %v275 = vld [vmem:[%s252 + $0x58] sm:$0xf]
      %v276 = vld [vmem:[%s252 + $0x5c] sm:$0xf]
      %v277 = vld [vmem:[%s252 + $0x60] sm:$0xf]
      %v278 = vld [vmem:[%s252 + $0x64] sm:$0xf]
      %v279 = vld [vmem:[%s252 + $0x68] sm:$0xf]
      %v280 = vld [vmem:[%s252 + $0x6c] sm:$0xf]
      %v281 = vld [vmem:[%s252 + $0x70] sm:$0xf]
      %v282 = vld [vmem:[%s252 + $0x74] sm:$0xf]
      %v283 = vld [vmem:[%s252 + $0x78] sm:$0xf]
      %v284 = vld [vmem:[%s252 + $0x7c] sm:$0xf]
      %v285 = vld [vmem:[%s252 + $0x80] sm:$0xf]
      %v286 = vld [vmem:[%s252 + $0x84] sm:$0xf]
      %v287 = vld [vmem:[%s252 + $0x88] sm:$0xf]
      %v288 = vld [vmem:[%s252 + $0x8c] sm:$0xf]
      %v289 = vunpack.c.l.bf16 %v253
      %v290 = vunpack.c.l.bf16 %v254
      %v291 = vunpack.c.l.bf16 %v255
      %v292 = vunpack.c.l.bf16 %v256
      %v293 = vunpack.c.l.bf16 %v257
      %v294 = vunpack.c.l.bf16 %v258
      %v295 = vunpack.c.l.bf16 %v259
      %v296 = vunpack.c.l.bf16 %v260
      %v297 = vunpack.c.l.bf16 %v261
      %v298 = vunpack.c.l.bf16 %v262
      %v299 = vunpack.c.l.bf16 %v263
      %v300 = vunpack.c.l.bf16 %v264
      %v301 = vunpack.c.l.bf16 %v265
      %v302 = vunpack.c.l.bf16 %v266
      %v303 = vunpack.c.l.bf16 %v267
      %v304 = vunpack.c.l.bf16 %v268
      %v305 = vunpack.c.l.bf16 %v269
      %v306 = vunpack.c.l.bf16 %v270
      %v307 = vunpack.c.l.bf16 %v271
      %v308 = vunpack.c.l.bf16 %v272
      %v309 = vunpack.c.l.bf16 %v273
      %v310 = vunpack.c.l.bf16 %v274
      %v311 = vunpack.c.l.bf16 %v275
      %v312 = vunpack.c.l.bf16 %v276
      %v313 = vunpack.c.l.bf16 %v277
      %v314 = vunpack.c.l.bf16 %v278
      %v315 = vunpack.c.l.bf16 %v279
      %v316 = vunpack.c.l.bf16 %v280
      %v317 = vunpack.c.l.bf16 %v281
      %v318 = vunpack.c.l.bf16 %v282
      %v319 = vunpack.c.l.bf16 %v283
      %v320 = vunpack.c.l.bf16 %v284
      %v321 = vunpack.c.l.bf16 %v285
      %v322 = vunpack.c.l.bf16 %v286
      %v323 = vunpack.c.l.bf16 %v287
      %v324 = vunpack.c.l.bf16 %v288
      %v325 = vld [vmem:[%s0] sm:$0x1]
      %v326 = vld [vmem:[%s1] sm:$0x1]
      %v328 = vperm.slane %v325, 0
      %v330 = vmul.f32 %v289, %v328
      %v331 = vmul.f32 %v290, %v328
      %v332 = vmul.f32 %v291, %v328
      %v333 = vmul.f32 %v292, %v328
      %v334 = vmul.f32 %v293, %v328
      %v335 = vmul.f32 %v294, %v328
      %v336 = vmul.f32 %v295, %v328
      %v337 = vmul.f32 %v296, %v328
      %v338 = vmul.f32 %v297, %v328
      %v339 = vmul.f32 %v298, %v328
      %v340 = vmul.f32 %v299, %v328
      %v341 = vmul.f32 %v300, %v328
      %v342 = vmul.f32 %v301, %v328
      %v343 = vmul.f32 %v302, %v328
      %v344 = vmul.f32 %v303, %v328
      %v345 = vmul.f32 %v304, %v328
      %v346 = vmul.f32 %v305, %v328
      %v347 = vmul.f32 %v306, %v328
      %v348 = vmul.f32 %v307, %v328
      %v349 = vmul.f32 %v308, %v328
      %v350 = vmul.f32 %v309, %v328
      %v351 = vmul.f32 %v310, %v328
      %v352 = vmul.f32 %v311, %v328
      %v353 = vmul.f32 %v312, %v328
      %v354 = vmul.f32 %v313, %v328
      %v355 = vmul.f32 %v314, %v328
      %v356 = vmul.f32 %v315, %v328
      %v357 = vmul.f32 %v316, %v328
      %v358 = vmul.f32 %v317, %v328
      %v359 = vmul.f32 %v318, %v328
      %v360 = vmul.f32 %v319, %v328
      %v361 = vmul.f32 %v320, %v328
      %v362 = vmul.f32 %v321, %v328
      %v363 = vmul.f32 %v322, %v328
      %v364 = vmul.f32 %v323, %v328
      %v365 = vmul.f32 %v324, %v328
      %v367 = vperm.slane %v326, 0
      %v369 = vadd.f32 %v330, %v367
      %v370 = vadd.f32 %v331, %v367
      %v371 = vadd.f32 %v332, %v367
      %v372 = vadd.f32 %v333, %v367
      %v373 = vadd.f32 %v334, %v367
      %v374 = vadd.f32 %v335, %v367
      %v375 = vadd.f32 %v336, %v367
      %v376 = vadd.f32 %v337, %v367
      %v377 = vadd.f32 %v338, %v367
      %v378 = vadd.f32 %v339, %v367
      %v379 = vadd.f32 %v340, %v367
      %v380 = vadd.f32 %v341, %v367
      %v381 = vadd.f32 %v342, %v367
      %v382 = vadd.f32 %v343, %v367
      %v383 = vadd.f32 %v344, %v367
      %v384 = vadd.f32 %v345, %v367
      %v385 = vadd.f32 %v346, %v367
      %v386 = vadd.f32 %v347, %v367
      %v387 = vadd.f32 %v348, %v367
      %v388 = vadd.f32 %v349, %v367
      %v389 = vadd.f32 %v350, %v367
      %v390 = vadd.f32 %v351, %v367
      %v391 = vadd.f32 %v352, %v367
      %v392 = vadd.f32 %v353, %v367
      %v393 = vadd.f32 %v354, %v367
      %v394 = vadd.f32 %v355, %v367
      %v395 = vadd.f32 %v356, %v367
      %v396 = vadd.f32 %v357, %v367
      %v397 = vadd.f32 %v358, %v367
      %v398 = vadd.f32 %v359, %v367
      %v399 = vadd.f32 %v360, %v367
      %v400 = vadd.f32 %v361, %v367
      %v401 = vadd.f32 %v362, %v367
      %v402 = vadd.f32 %v363, %v367
      %v403 = vadd.f32 %v364, %v367
      %v404 = vadd.f32 %v365, %v367
      %v405 = vmax.f32 %v369, 0.0
      %v406 = vmax.f32 %v370, 0.0
      %v407 = vmax.f32 %v371, 0.0
      %v408 = vmax.f32 %v372, 0.0
      %v409 = vmax.f32 %v373, 0.0
      %v410 = vmax.f32 %v374, 0.0
      %v411 = vmax.f32 %v375, 0.0
      %v412 = vmax.f32 %v376, 0.0
      %v413 = vmax.f32 %v377, 0.0
      %v414 = vmax.f32 %v378, 0.0
      %v415 = vmax.f32 %v379, 0.0
      %v416 = vmax.f32 %v380, 0.0
      %v417 = vmax.f32 %v381, 0.0
      %v418 = vmax.f32 %v382, 0.0
      %v419 = vmax.f32 %v383, 0.0
      %v420 = vmax.f32 %v384, 0.0
      %v421 = vmax.f32 %v385, 0.0
      %v422 = vmax.f32 %v386, 0.0
      %v423 = vmax.f32 %v387, 0.0
      %v424 = vmax.f32 %v388, 0.0
      %v425 = vmax.f32 %v389, 0.0
      %v426 = vmax.f32 %v390, 0.0
      %v427 = vmax.f32 %v391, 0.0
      %v428 = vmax.f32 %v392, 0.0
      %v429 = vmax.f32 %v393, 0.0
      %v430 = vmax.f32 %v394, 0.0
      %v431 = vmax.f32 %v395, 0.0
      %v432 = vmax.f32 %v396, 0.0
      %v433 = vmax.f32 %v397, 0.0
      %v434 = vmax.f32 %v398, 0.0
      %v435 = vmax.f32 %v399, 0.0
      %v436 = vmax.f32 %v400, 0.0
      %v437 = vmax.f32 %v401, 0.0
      %v438 = vmax.f32 %v402, 0.0
      %v439 = vmax.f32 %v403, 0.0
      %v440 = vmax.f32 %v404, 0.0
      %v441 = vstv %s249
      %v442 = vadd.s32 %v441, 1
      %v443 = vadd.s32 %v441, 2
      %v444 = vadd.s32 %v441, 3
      %v445 = vadd.s32 %v441, 4
      %v446 = vadd.s32 %v441, 5
      %v447 = vadd.s32 %v441, 6
      %v448 = vadd.s32 %v441, 7
      %v449 = vadd.s32 %v441, 8
      %v450 = vadd.s32 %v441, 9
      %v451 = vadd.s32 %v441, 10
      %v452 = vadd.s32 %v441, 11
      %v453 = vadd.s32 %v441, 12
      %v454 = vadd.s32 %v441, 13
      %v455 = vadd.s32 %v441, 14
      %v456 = vadd.s32 %v441, 15
      %v457 = vadd.s32 %v441, 16
      %v458 = vadd.s32 %v441, 17
      %vm459 = vcmp.ge.s32.totalorder %v441, 1
      %vm460 = vcmp.ge.s32.totalorder %v442, 1
      %vm461 = vcmp.ge.s32.totalorder %v443, 1
      %vm462 = vcmp.ge.s32.totalorder %v444, 1
      %vm463 = vcmp.ge.s32.totalorder %v445, 1
      %vm464 = vcmp.ge.s32.totalorder %v446, 1
      %vm465 = vcmp.ge.s32.totalorder %v447, 1
      %vm466 = vcmp.ge.s32.totalorder %v448, 1
      %vm467 = vcmp.ge.s32.totalorder %v449, 1
      %vm468 = vcmp.ge.s32.totalorder %v450, 1
      %vm469 = vcmp.ge.s32.totalorder %v451, 1
      %vm470 = vcmp.ge.s32.totalorder %v452, 1
      %vm471 = vcmp.ge.s32.totalorder %v453, 1
      %vm472 = vcmp.ge.s32.totalorder %v454, 1
      %vm473 = vcmp.ge.s32.totalorder %v455, 1
      %vm474 = vcmp.ge.s32.totalorder %v456, 1
      %vm475 = vcmp.ge.s32.totalorder %v457, 1
      %vm476 = vcmp.ge.s32.totalorder %v458, 1
      %vm477 = vcmp.lt.s32.totalorder %v441, 17
      %vm478 = vcmp.lt.s32.totalorder %v442, 17
      %vm479 = vcmp.lt.s32.totalorder %v443, 17
      %vm480 = vcmp.lt.s32.totalorder %v444, 17
      %vm481 = vcmp.lt.s32.totalorder %v445, 17
      %vm482 = vcmp.lt.s32.totalorder %v446, 17
      %vm483 = vcmp.lt.s32.totalorder %v447, 17
      %vm484 = vcmp.lt.s32.totalorder %v448, 17
      %vm485 = vcmp.lt.s32.totalorder %v449, 17
      %vm486 = vcmp.lt.s32.totalorder %v450, 17
      %vm487 = vcmp.lt.s32.totalorder %v451, 17
      %vm488 = vcmp.lt.s32.totalorder %v452, 17
      %vm489 = vcmp.lt.s32.totalorder %v453, 17
      %vm490 = vcmp.lt.s32.totalorder %v454, 17
      %vm491 = vcmp.lt.s32.totalorder %v455, 17
      %vm492 = vcmp.lt.s32.totalorder %v456, 17
      %vm493 = vcmp.lt.s32.totalorder %v457, 17
      %vm494 = vcmp.lt.s32.totalorder %v458, 17
      %vm495 = vmand %vm459, %vm477
      %vm496 = vmand %vm460, %vm478
      %vm497 = vmand %vm461, %vm479
      %vm498 = vmand %vm462, %vm480
      %vm499 = vmand %vm463, %vm481
      %vm500 = vmand %vm464, %vm482
      %vm501 = vmand %vm465, %vm483
      %vm502 = vmand %vm466, %vm484
      %vm503 = vmand %vm467, %vm485
      %vm504 = vmand %vm468, %vm486
      %vm505 = vmand %vm469, %vm487
      %vm506 = vmand %vm470, %vm488
      %vm507 = vmand %vm471, %vm489
      %vm508 = vmand %vm472, %vm490
      %vm509 = vmand %vm473, %vm491
      %vm510 = vmand %vm474, %vm492
      %vm511 = vmand %vm475, %vm493
      %vm512 = vmand %vm476, %vm494
      %v513 = vsel %vm495, %v405, 0.0
      %v514 = vsel %vm495, %v406, 0.0
      %v515 = vsel %vm496, %v407, 0.0
      %v516 = vsel %vm496, %v408, 0.0
      %v517 = vsel %vm497, %v409, 0.0
      %v518 = vsel %vm497, %v410, 0.0
      %v519 = vsel %vm498, %v411, 0.0
      %v520 = vsel %vm498, %v412, 0.0
      %v521 = vsel %vm499, %v413, 0.0
      %v522 = vsel %vm499, %v414, 0.0
      %v523 = vsel %vm500, %v415, 0.0
      %v524 = vsel %vm500, %v416, 0.0
      %v525 = vsel %vm501, %v417, 0.0
      %v526 = vsel %vm501, %v418, 0.0
      %v527 = vsel %vm502, %v419, 0.0
      %v528 = vsel %vm502, %v420, 0.0
      %v529 = vsel %vm503, %v421, 0.0
      %v530 = vsel %vm503, %v422, 0.0
      %v531 = vsel %vm504, %v423, 0.0
      %v532 = vsel %vm504, %v424, 0.0
      %v533 = vsel %vm505, %v425, 0.0
      %v534 = vsel %vm505, %v426, 0.0
      %v535 = vsel %vm506, %v427, 0.0
      %v536 = vsel %vm506, %v428, 0.0
      %v537 = vsel %vm507, %v429, 0.0
      %v538 = vsel %vm507, %v430, 0.0
      %v539 = vsel %vm508, %v431, 0.0
      %v540 = vsel %vm508, %v432, 0.0
      %v541 = vsel %vm509, %v433, 0.0
      %v542 = vsel %vm509, %v434, 0.0
      %v543 = vsel %vm510, %v435, 0.0
      %v544 = vsel %vm510, %v436, 0.0
      %v545 = vsel %vm511, %v437, 0.0
      %v546 = vsel %vm511, %v438, 0.0
      %v547 = vsel %vm512, %v439, 0.0
      %v548 = vsel %vm512, %v440, 0.0
      %vm585 = vcmask 1040384
      %v586 = vrot.slane %v513, 7
      %v587 = vrot.slane %v514, 7
      %v588 = vsel %vm585, %v586, %v587
      %v589 = vrot.slane %v515, 7
      %v590 = vrot.slane %v516, 7
      %v591 = vsel %vm585, %v589, %v590
      %v592 = vrot.slane %v517, 7
      %v593 = vrot.slane %v518, 7
      %v594 = vsel %vm585, %v592, %v593
      %v595 = vrot.slane %v519, 7
      %v596 = vrot.slane %v520, 7
      %v597 = vsel %vm585, %v595, %v596
      %v598 = vrot.slane %v521, 7
      %v599 = vrot.slane %v522, 7
      %v600 = vsel %vm585, %v598, %v599
      %v601 = vrot.slane %v523, 7
      %v602 = vrot.slane %v524, 7
      %v603 = vsel %vm585, %v601, %v602
      %v604 = vrot.slane %v525, 7
      %v605 = vrot.slane %v526, 7
      %v606 = vsel %vm585, %v604, %v605
      %v607 = vrot.slane %v527, 7
      %v608 = vrot.slane %v528, 7
      %v609 = vsel %vm585, %v607, %v608
      %v610 = vrot.slane %v529, 7
      %v611 = vrot.slane %v530, 7
      %v612 = vsel %vm585, %v610, %v611
      %v613 = vrot.slane %v531, 7
      %v614 = vrot.slane %v532, 7
      %v615 = vsel %vm585, %v613, %v614
      %v616 = vrot.slane %v533, 7
      %v617 = vrot.slane %v534, 7
      %v618 = vsel %vm585, %v616, %v617
      %v619 = vrot.slane %v535, 7
      %v620 = vrot.slane %v536, 7
      %v621 = vsel %vm585, %v619, %v620
      %v622 = vrot.slane %v537, 7
      %v623 = vrot.slane %v538, 7
      %v624 = vsel %vm585, %v622, %v623
      %v625 = vrot.slane %v539, 7
      %v626 = vrot.slane %v540, 7
      %v627 = vsel %vm585, %v625, %v626
      %v628 = vrot.slane %v541, 7
      %v629 = vrot.slane %v542, 7
      %v630 = vsel %vm585, %v628, %v629
      %v631 = vrot.slane %v543, 7
      %v632 = vrot.slane %v544, 7
      %v633 = vsel %vm585, %v631, %v632
      %v634 = vrot.slane %v545, 7
      %v635 = vrot.slane %v546, 7
      %v636 = vsel %vm585, %v634, %v635
      %v637 = vrot.slane %v547, 7
      %v638 = vrot.slane %v548, 7
      %v639 = vsel %vm585, %v637, %v638
      %v692 = vsel %vm585, 0.0, %v586
      %v693 = vsel %vm585, 0.0, %v589
      %v694 = vsel %vm585, 0.0, %v592
      %v695 = vsel %vm585, 0.0, %v595
      %v696 = vsel %vm585, 0.0, %v598
      %v697 = vsel %vm585, 0.0, %v601
      %v698 = vsel %vm585, 0.0, %v604
      %v699 = vsel %vm585, 0.0, %v607
      %v700 = vsel %vm585, 0.0, %v610
      %v701 = vsel %vm585, 0.0, %v613
      %v702 = vsel %vm585, 0.0, %v616
      %v703 = vsel %vm585, 0.0, %v619
      %v704 = vsel %vm585, 0.0, %v622
      %v705 = vsel %vm585, 0.0, %v625
      %v706 = vsel %vm585, 0.0, %v628
      %v707 = vsel %vm585, 0.0, %v631
      %v708 = vsel %vm585, 0.0, %v634
      %v709 = vsel %vm585, 0.0, %v637
      %v710 = vsel %vm585, %v587, 0.0
      %v711 = vsel %vm585, %v590, 0.0
      %v712 = vsel %vm585, %v593, 0.0
      %v713 = vsel %vm585, %v596, 0.0
      %v714 = vsel %vm585, %v599, 0.0
      %v715 = vsel %vm585, %v602, 0.0
      %v716 = vsel %vm585, %v605, 0.0
      %v717 = vsel %vm585, %v608, 0.0
      %v718 = vsel %vm585, %v611, 0.0
      %v719 = vsel %vm585, %v614, 0.0
      %v720 = vsel %vm585, %v617, 0.0
      %v721 = vsel %vm585, %v620, 0.0
      %v722 = vsel %vm585, %v623, 0.0
      %v723 = vsel %vm585, %v626, 0.0
      %v724 = vsel %vm585, %v629, 0.0
      %v725 = vsel %vm585, %v632, 0.0
      %v726 = vsel %vm585, %v635, 0.0
      %v727 = vsel %vm585, %v638, 0.0
      %vm760 = vcmask 1046528
      %v761 = vrot.slane %v692, 1
      %v762 = vrot.slane %v588, 1
      %v763 = vsel %vm760, %v761, %v762
      %v764 = vrot.slane %v710, 1
      %v765 = vsel %vm760, %v762, %v764
      %v766 = vrot.slane %v693, 1
      %v767 = vrot.slane %v591, 1
      %v768 = vsel %vm760, %v766, %v767
      %v769 = vrot.slane %v711, 1
      %v770 = vsel %vm760, %v767, %v769
      %v771 = vrot.slane %v694, 1
      %v772 = vrot.slane %v594, 1
      %v773 = vsel %vm760, %v771, %v772
      %v774 = vrot.slane %v712, 1
      %v775 = vsel %vm760, %v772, %v774
      %v776 = vrot.slane %v695, 1
      %v777 = vrot.slane %v597, 1
      %v778 = vsel %vm760, %v776, %v777
      %v779 = vrot.slane %v713, 1
      %v780 = vsel %vm760, %v777, %v779
      %v781 = vrot.slane %v696, 1
      %v782 = vrot.slane %v600, 1
      %v783 = vsel %vm760, %v781, %v782
      %v784 = vrot.slane %v714, 1
      %v785 = vsel %vm760, %v782, %v784
      %v786 = vrot.slane %v697, 1
      %v787 = vrot.slane %v603, 1
      %v788 = vsel %vm760, %v786, %v787
      %v789 = vrot.slane %v715, 1
      %v790 = vsel %vm760, %v787, %v789
      %v791 = vrot.slane %v698, 1
      %v792 = vrot.slane %v606, 1
      %v793 = vsel %vm760, %v791, %v792
      %v794 = vrot.slane %v716, 1
      %v795 = vsel %vm760, %v792, %v794
      %v796 = vrot.slane %v699, 1
      %v797 = vrot.slane %v609, 1
      %v798 = vsel %vm760, %v796, %v797
      %v799 = vrot.slane %v717, 1
      %v800 = vsel %vm760, %v797, %v799
      %v801 = vrot.slane %v700, 1
      %v802 = vrot.slane %v612, 1
      %v803 = vsel %vm760, %v801, %v802
      %v804 = vrot.slane %v718, 1
      %v805 = vsel %vm760, %v802, %v804
      %v806 = vrot.slane %v701, 1
      %v807 = vrot.slane %v615, 1
      %v808 = vsel %vm760, %v806, %v807
      %v809 = vrot.slane %v719, 1
      %v810 = vsel %vm760, %v807, %v809
      %v811 = vrot.slane %v702, 1
      %v812 = vrot.slane %v618, 1
      %v813 = vsel %vm760, %v811, %v812
      %v814 = vrot.slane %v720, 1
      %v815 = vsel %vm760, %v812, %v814
      %v816 = vrot.slane %v703, 1
      %v817 = vrot.slane %v621, 1
      %v818 = vsel %vm760, %v816, %v817
      %v819 = vrot.slane %v721, 1
      %v820 = vsel %vm760, %v817, %v819
      %v821 = vrot.slane %v704, 1
      %v822 = vrot.slane %v624, 1
      %v823 = vsel %vm760, %v821, %v822
      %v824 = vrot.slane %v722, 1
      %v825 = vsel %vm760, %v822, %v824
      %v826 = vrot.slane %v705, 1
      %v827 = vrot.slane %v627, 1
      %v828 = vsel %vm760, %v826, %v827
      %v829 = vrot.slane %v723, 1
      %v830 = vsel %vm760, %v827, %v829
      %v831 = vrot.slane %v706, 1
      %v832 = vrot.slane %v630, 1
      %v833 = vsel %vm760, %v831, %v832
      %v834 = vrot.slane %v724, 1
      %v835 = vsel %vm760, %v832, %v834
      %v836 = vrot.slane %v707, 1
      %v837 = vrot.slane %v633, 1
      %v838 = vsel %vm760, %v836, %v837
      %v839 = vrot.slane %v725, 1
      %v840 = vsel %vm760, %v837, %v839
      %vm841 = vcmask 1045504
      %v842 = vrot.slane %v692, 2
      %v843 = vrot.slane %v588, 2
      %v844 = vsel %vm841, %v842, %v843
      %v845 = vrot.slane %v710, 2
      %v846 = vsel %vm841, %v843, %v845
      %v847 = vrot.slane %v693, 2
      %v848 = vrot.slane %v591, 2
      %v849 = vsel %vm841, %v847, %v848
      %v850 = vrot.slane %v711, 2
      %v851 = vsel %vm841, %v848, %v850
      %v852 = vrot.slane %v694, 2
      %v853 = vrot.slane %v594, 2
      %v854 = vsel %vm841, %v852, %v853
      %v855 = vrot.slane %v712, 2
      %v856 = vsel %vm841, %v853, %v855
      %v857 = vrot.slane %v695, 2
      %v858 = vrot.slane %v597, 2
      %v859 = vsel %vm841, %v857, %v858
      %v860 = vrot.slane %v713, 2
      %v861 = vsel %vm841, %v858, %v860
      %v862 = vrot.slane %v696, 2
      %v863 = vrot.slane %v600, 2
      %v864 = vsel %vm841, %v862, %v863
      %v865 = vrot.slane %v714, 2
      %v866 = vsel %vm841, %v863, %v865
      %v867 = vrot.slane %v697, 2
      %v868 = vrot.slane %v603, 2
      %v869 = vsel %vm841, %v867, %v868
      %v870 = vrot.slane %v715, 2
      %v871 = vsel %vm841, %v868, %v870
      %v872 = vrot.slane %v698, 2
      %v873 = vrot.slane %v606, 2
      %v874 = vsel %vm841, %v872, %v873
      %v875 = vrot.slane %v716, 2
      %v876 = vsel %vm841, %v873, %v875
      %v877 = vrot.slane %v699, 2
      %v878 = vrot.slane %v609, 2
      %v879 = vsel %vm841, %v877, %v878
      %v880 = vrot.slane %v717, 2
      %v881 = vsel %vm841, %v878, %v880
      %v882 = vrot.slane %v700, 2
      %v883 = vrot.slane %v612, 2
      %v884 = vsel %vm841, %v882, %v883
      %v885 = vrot.slane %v718, 2
      %v886 = vsel %vm841, %v883, %v885
      %v887 = vrot.slane %v701, 2
      %v888 = vrot.slane %v615, 2
      %v889 = vsel %vm841, %v887, %v888
      %v890 = vrot.slane %v719, 2
      %v891 = vsel %vm841, %v888, %v890
      %v892 = vrot.slane %v702, 2
      %v893 = vrot.slane %v618, 2
      %v894 = vsel %vm841, %v892, %v893
      %v895 = vrot.slane %v720, 2
      %v896 = vsel %vm841, %v893, %v895
      %v897 = vrot.slane %v703, 2
      %v898 = vrot.slane %v621, 2
      %v899 = vsel %vm841, %v897, %v898
      %v900 = vrot.slane %v721, 2
      %v901 = vsel %vm841, %v898, %v900
      %v902 = vrot.slane %v704, 2
      %v903 = vrot.slane %v624, 2
      %v904 = vsel %vm841, %v902, %v903
      %v905 = vrot.slane %v722, 2
      %v906 = vsel %vm841, %v903, %v905
      %v907 = vrot.slane %v705, 2
      %v908 = vrot.slane %v627, 2
      %v909 = vsel %vm841, %v907, %v908
      %v910 = vrot.slane %v723, 2
      %v911 = vsel %vm841, %v908, %v910
      %v912 = vrot.slane %v706, 2
      %v913 = vrot.slane %v630, 2
      %v914 = vsel %vm841, %v912, %v913
      %v915 = vrot.slane %v724, 2
      %v916 = vsel %vm841, %v913, %v915
      %v917 = vrot.slane %v707, 2
      %v918 = vrot.slane %v633, 2
      %v919 = vsel %vm841, %v917, %v918
      %v920 = vrot.slane %v725, 2
      %v921 = vsel %vm841, %v918, %v920
      %v924 = vrot.slane %v708, 1
      %v925 = vrot.slane %v636, 1
      %v926 = vsel %vm760, %v924, %v925
      %v927 = vrot.slane %v726, 1
      %v928 = vsel %vm760, %v925, %v927
      %v929 = vrot.slane %v708, 2
      %v930 = vrot.slane %v636, 2
      %v931 = vsel %vm841, %v929, %v930
      %v932 = vrot.slane %v726, 2
      %v933 = vsel %vm841, %v930, %v932
      %v936 = vrot.slane %v709, 1
      %v937 = vrot.slane %v639, 1
      %v938 = vsel %vm760, %v936, %v937
      %v939 = vrot.slane %v727, 1
      %v940 = vsel %vm760, %v937, %v939
      %v941 = vrot.slane %v709, 2
      %v942 = vrot.slane %v639, 2
      %v943 = vsel %vm841, %v941, %v942
      %v944 = vrot.slane %v727, 2
      %v945 = vsel %vm841, %v942, %v944
      %946 = vrot.lane.b32.xlu0 %v763, 4
      %v947 = vpop.permute.xlu0 %946
      %948 = vrot.lane.b32.xlu0 %v765, 4
      %v949 = vpop.permute.xlu0 %948
      %950 = vrot.lane.b32.xlu0 %v768, 4
      %v951 = vpop.permute.xlu0 %950
      %952 = vrot.lane.b32.xlu0 %v770, 4
      %v953 = vpop.permute.xlu0 %952
      %954 = vrot.lane.b32.xlu0 %v773, 4
      %v955 = vpop.permute.xlu0 %954
      %956 = vrot.lane.b32.xlu0 %v775, 4
      %v957 = vpop.permute.xlu0 %956
      %958 = vrot.lane.b32.xlu0 %v778, 4
      %v959 = vpop.permute.xlu0 %958
      %960 = vrot.lane.b32.xlu0 %v780, 4
      %v961 = vpop.permute.xlu0 %960
      %962 = vrot.lane.b32.xlu0 %v783, 4
      %v963 = vpop.permute.xlu0 %962
      %964 = vrot.lane.b32.xlu0 %v785, 4
      %v965 = vpop.permute.xlu0 %964
      %966 = vrot.lane.b32.xlu0 %v788, 4
      %v967 = vpop.permute.xlu0 %966
      %968 = vrot.lane.b32.xlu0 %v790, 4
      %v969 = vpop.permute.xlu0 %968
      %970 = vrot.lane.b32.xlu0 %v793, 4
      %v971 = vpop.permute.xlu0 %970
      %972 = vrot.lane.b32.xlu0 %v795, 4
      %v973 = vpop.permute.xlu0 %972
      %974 = vrot.lane.b32.xlu0 %v798, 4
      %v975 = vpop.permute.xlu0 %974
      %976 = vrot.lane.b32.xlu0 %v800, 4
      %v977 = vpop.permute.xlu0 %976
      %978 = vrot.lane.b32.xlu0 %v803, 4
      %v979 = vpop.permute.xlu0 %978
      %980 = vrot.lane.b32.xlu0 %v805, 4
      %v981 = vpop.permute.xlu0 %980
      %982 = vrot.lane.b32.xlu0 %v808, 4
      %v983 = vpop.permute.xlu0 %982
      %984 = vrot.lane.b32.xlu0 %v810, 4
      %v985 = vpop.permute.xlu0 %984
      %986 = vrot.lane.b32.xlu0 %v813, 4
      %v987 = vpop.permute.xlu0 %986
      %988 = vrot.lane.b32.xlu0 %v815, 4
      %v989 = vpop.permute.xlu0 %988
      %990 = vrot.lane.b32.xlu0 %v818, 4
      %v991 = vpop.permute.xlu0 %990
      %992 = vrot.lane.b32.xlu0 %v820, 4
      %v993 = vpop.permute.xlu0 %992
      %994 = vrot.lane.b32.xlu0 %v823, 4
      %v995 = vpop.permute.xlu0 %994
      %996 = vrot.lane.b32.xlu0 %v825, 4
      %v997 = vpop.permute.xlu0 %996
      %998 = vrot.lane.b32.xlu0 %v828, 4
      %v999 = vpop.permute.xlu0 %998
      %1000 = vrot.lane.b32.xlu0 %v830, 4
      %v1001 = vpop.permute.xlu0 %1000
      %1002 = vrot.lane.b32.xlu0 %v833, 4
      %v1003 = vpop.permute.xlu0 %1002
      %1004 = vrot.lane.b32.xlu0 %v835, 4
      %v1005 = vpop.permute.xlu0 %1004
      %1006 = vrot.lane.b32.xlu0 %v838, 4
      %v1007 = vpop.permute.xlu0 %1006
      %1008 = vrot.lane.b32.xlu0 %v840, 4
      %v1009 = vpop.permute.xlu0 %1008
      %1042 = vrot.lane.b32.xlu0 %v844, 8
      %v1043 = vpop.permute.xlu0 %1042
      %1044 = vrot.lane.b32.xlu0 %v846, 8
      %v1045 = vpop.permute.xlu0 %1044
      %1046 = vrot.lane.b32.xlu0 %v849, 8
      %v1047 = vpop.permute.xlu0 %1046
      %1048 = vrot.lane.b32.xlu0 %v851, 8
      %v1049 = vpop.permute.xlu0 %1048
      %1050 = vrot.lane.b32.xlu0 %v854, 8
      %v1051 = vpop.permute.xlu0 %1050
      %1052 = vrot.lane.b32.xlu0 %v856, 8
      %v1053 = vpop.permute.xlu0 %1052
      %1054 = vrot.lane.b32.xlu0 %v859, 8
      %v1055 = vpop.permute.xlu0 %1054
      %1056 = vrot.lane.b32.xlu0 %v861, 8
      %v1057 = vpop.permute.xlu0 %1056
      %1058 = vrot.lane.b32.xlu0 %v864, 8
      %v1059 = vpop.permute.xlu0 %1058
      %1060 = vrot.lane.b32.xlu0 %v866, 8
      %v1061 = vpop.permute.xlu0 %1060
      %1062 = vrot.lane.b32.xlu0 %v869, 8
      %v1063 = vpop.permute.xlu0 %1062
      %1064 = vrot.lane.b32.xlu0 %v871, 8
      %v1065 = vpop.permute.xlu0 %1064
      %1066 = vrot.lane.b32.xlu0 %v874, 8
      %v1067 = vpop.permute.xlu0 %1066
      %1068 = vrot.lane.b32.xlu0 %v876, 8
      %v1069 = vpop.permute.xlu0 %1068
      %1070 = vrot.lane.b32.xlu0 %v879, 8
      %v1071 = vpop.permute.xlu0 %1070
      %1072 = vrot.lane.b32.xlu0 %v881, 8
      %v1073 = vpop.permute.xlu0 %1072
      %1074 = vrot.lane.b32.xlu0 %v884, 8
      %v1075 = vpop.permute.xlu0 %1074
      %1076 = vrot.lane.b32.xlu0 %v886, 8
      %v1077 = vpop.permute.xlu0 %1076
      %1078 = vrot.lane.b32.xlu0 %v889, 8
      %v1079 = vpop.permute.xlu0 %1078
      %1080 = vrot.lane.b32.xlu0 %v891, 8
      %v1081 = vpop.permute.xlu0 %1080
      %1082 = vrot.lane.b32.xlu0 %v894, 8
      %v1083 = vpop.permute.xlu0 %1082
      %1084 = vrot.lane.b32.xlu0 %v896, 8
      %v1085 = vpop.permute.xlu0 %1084
      %1086 = vrot.lane.b32.xlu0 %v899, 8
      %v1087 = vpop.permute.xlu0 %1086
      %1088 = vrot.lane.b32.xlu0 %v901, 8
      %v1089 = vpop.permute.xlu0 %1088
      %1090 = vrot.lane.b32.xlu0 %v904, 8
      %v1091 = vpop.permute.xlu0 %1090
      %1092 = vrot.lane.b32.xlu0 %v906, 8
      %v1093 = vpop.permute.xlu0 %1092
      %1094 = vrot.lane.b32.xlu0 %v909, 8
      %v1095 = vpop.permute.xlu0 %1094
      %1096 = vrot.lane.b32.xlu0 %v911, 8
      %v1097 = vpop.permute.xlu0 %1096
      %1098 = vrot.lane.b32.xlu0 %v914, 8
      %v1099 = vpop.permute.xlu0 %1098
      %1100 = vrot.lane.b32.xlu0 %v916, 8
      %v1101 = vpop.permute.xlu0 %1100
      %1102 = vrot.lane.b32.xlu0 %v919, 8
      %v1103 = vpop.permute.xlu0 %1102
      %1104 = vrot.lane.b32.xlu0 %v921, 8
      %v1105 = vpop.permute.xlu0 %1104
      %1138 = vrot.lane.b32.xlu0 %v693, 12
      %v1139 = vpop.permute.xlu0 %1138
      %1140 = vrot.lane.b32.xlu0 %v591, 12
      %v1141 = vpop.permute.xlu0 %1140
      %1142 = vrot.lane.b32.xlu0 %v694, 12
      %v1143 = vpop.permute.xlu0 %1142
      %1144 = vrot.lane.b32.xlu0 %v594, 12
      %v1145 = vpop.permute.xlu0 %1144
      %1146 = vrot.lane.b32.xlu0 %v695, 12
      %v1147 = vpop.permute.xlu0 %1146
      %1148 = vrot.lane.b32.xlu0 %v597, 12
      %v1149 = vpop.permute.xlu0 %1148
      %1150 = vrot.lane.b32.xlu0 %v696, 12
      %v1151 = vpop.permute.xlu0 %1150
      %1152 = vrot.lane.b32.xlu0 %v600, 12
      %v1153 = vpop.permute.xlu0 %1152
      %1154 = vrot.lane.b32.xlu0 %v697, 12
      %v1155 = vpop.permute.xlu0 %1154
      %1156 = vrot.lane.b32.xlu0 %v603, 12
      %v1157 = vpop.permute.xlu0 %1156
      %1158 = vrot.lane.b32.xlu0 %v698, 12
      %v1159 = vpop.permute.xlu0 %1158
      %1160 = vrot.lane.b32.xlu0 %v606, 12
      %v1161 = vpop.permute.xlu0 %1160
      %1162 = vrot.lane.b32.xlu0 %v699, 12
      %v1163 = vpop.permute.xlu0 %1162
      %1164 = vrot.lane.b32.xlu0 %v609, 12
      %v1165 = vpop.permute.xlu0 %1164
      %1166 = vrot.lane.b32.xlu0 %v700, 12
      %v1167 = vpop.permute.xlu0 %1166
      %1168 = vrot.lane.b32.xlu0 %v612, 12
      %v1169 = vpop.permute.xlu0 %1168
      %1170 = vrot.lane.b32.xlu0 %v701, 12
      %v1171 = vpop.permute.xlu0 %1170
      %1172 = vrot.lane.b32.xlu0 %v615, 12
      %v1173 = vpop.permute.xlu0 %1172
      %1174 = vrot.lane.b32.xlu0 %v702, 12
      %v1175 = vpop.permute.xlu0 %1174
      %1176 = vrot.lane.b32.xlu0 %v618, 12
      %v1177 = vpop.permute.xlu0 %1176
      %1178 = vrot.lane.b32.xlu0 %v703, 12
      %v1179 = vpop.permute.xlu0 %1178
      %1180 = vrot.lane.b32.xlu0 %v621, 12
      %v1181 = vpop.permute.xlu0 %1180
      %1182 = vrot.lane.b32.xlu0 %v704, 12
      %v1183 = vpop.permute.xlu0 %1182
      %1184 = vrot.lane.b32.xlu0 %v624, 12
      %v1185 = vpop.permute.xlu0 %1184
      %1186 = vrot.lane.b32.xlu0 %v705, 12
      %v1187 = vpop.permute.xlu0 %1186
      %1188 = vrot.lane.b32.xlu0 %v627, 12
      %v1189 = vpop.permute.xlu0 %1188
      %1190 = vrot.lane.b32.xlu0 %v706, 12
      %v1191 = vpop.permute.xlu0 %1190
      %1192 = vrot.lane.b32.xlu0 %v630, 12
      %v1193 = vpop.permute.xlu0 %1192
      %1194 = vrot.lane.b32.xlu0 %v707, 12
      %v1195 = vpop.permute.xlu0 %1194
      %1196 = vrot.lane.b32.xlu0 %v633, 12
      %v1197 = vpop.permute.xlu0 %1196
      %1198 = vrot.lane.b32.xlu0 %v708, 12
      %v1199 = vpop.permute.xlu0 %1198
      %1200 = vrot.lane.b32.xlu0 %v636, 12
      %v1201 = vpop.permute.xlu0 %1200
      %1234 = vrot.lane.b32.xlu0 %v768, 16
      %v1235 = vpop.permute.xlu0 %1234
      %1236 = vrot.lane.b32.xlu0 %v770, 16
      %v1237 = vpop.permute.xlu0 %1236
      %1238 = vrot.lane.b32.xlu0 %v773, 16
      %v1239 = vpop.permute.xlu0 %1238
      %1240 = vrot.lane.b32.xlu0 %v775, 16
      %v1241 = vpop.permute.xlu0 %1240
      %1242 = vrot.lane.b32.xlu0 %v778, 16
      %v1243 = vpop.permute.xlu0 %1242
      %1244 = vrot.lane.b32.xlu0 %v780, 16
      %v1245 = vpop.permute.xlu0 %1244
      %1246 = vrot.lane.b32.xlu0 %v783, 16
      %v1247 = vpop.permute.xlu0 %1246
      %1248 = vrot.lane.b32.xlu0 %v785, 16
      %v1249 = vpop.permute.xlu0 %1248
      %1250 = vrot.lane.b32.xlu0 %v788, 16
      %v1251 = vpop.permute.xlu0 %1250
      %1252 = vrot.lane.b32.xlu0 %v790, 16
      %v1253 = vpop.permute.xlu0 %1252
      %1254 = vrot.lane.b32.xlu0 %v793, 16
      %v1255 = vpop.permute.xlu0 %1254
      %1256 = vrot.lane.b32.xlu0 %v795, 16
      %v1257 = vpop.permute.xlu0 %1256
      %1258 = vrot.lane.b32.xlu0 %v798, 16
      %v1259 = vpop.permute.xlu0 %1258
      %1260 = vrot.lane.b32.xlu0 %v800, 16
      %v1261 = vpop.permute.xlu0 %1260
      %1262 = vrot.lane.b32.xlu0 %v803, 16
      %v1263 = vpop.permute.xlu0 %1262
      %1264 = vrot.lane.b32.xlu0 %v805, 16
      %v1265 = vpop.permute.xlu0 %1264
      %1266 = vrot.lane.b32.xlu0 %v808, 16
      %v1267 = vpop.permute.xlu0 %1266
      %1268 = vrot.lane.b32.xlu0 %v810, 16
      %v1269 = vpop.permute.xlu0 %1268
      %1270 = vrot.lane.b32.xlu0 %v813, 16
      %v1271 = vpop.permute.xlu0 %1270
      %1272 = vrot.lane.b32.xlu0 %v815, 16
      %v1273 = vpop.permute.xlu0 %1272
      %1274 = vrot.lane.b32.xlu0 %v818, 16
      %v1275 = vpop.permute.xlu0 %1274
      %1276 = vrot.lane.b32.xlu0 %v820, 16
      %v1277 = vpop.permute.xlu0 %1276
      %1278 = vrot.lane.b32.xlu0 %v823, 16
      %v1279 = vpop.permute.xlu0 %1278
      %1280 = vrot.lane.b32.xlu0 %v825, 16
      %v1281 = vpop.permute.xlu0 %1280
      %1282 = vrot.lane.b32.xlu0 %v828, 16
      %v1283 = vpop.permute.xlu0 %1282
      %1284 = vrot.lane.b32.xlu0 %v830, 16
      %v1285 = vpop.permute.xlu0 %1284
      %1286 = vrot.lane.b32.xlu0 %v833, 16
      %v1287 = vpop.permute.xlu0 %1286
      %1288 = vrot.lane.b32.xlu0 %v835, 16
      %v1289 = vpop.permute.xlu0 %1288
      %1290 = vrot.lane.b32.xlu0 %v838, 16
      %v1291 = vpop.permute.xlu0 %1290
      %1292 = vrot.lane.b32.xlu0 %v840, 16
      %v1293 = vpop.permute.xlu0 %1292
      %1294 = vrot.lane.b32.xlu0 %v926, 16
      %v1295 = vpop.permute.xlu0 %1294
      %1296 = vrot.lane.b32.xlu0 %v928, 16
      %v1297 = vpop.permute.xlu0 %1296
      %1330 = vrot.lane.b32.xlu0 %v849, 20
      %v1331 = vpop.permute.xlu0 %1330
      %1332 = vrot.lane.b32.xlu0 %v851, 20
      %v1333 = vpop.permute.xlu0 %1332
      %1334 = vrot.lane.b32.xlu0 %v854, 20
      %v1335 = vpop.permute.xlu0 %1334
      %1336 = vrot.lane.b32.xlu0 %v856, 20
      %v1337 = vpop.permute.xlu0 %1336
      %1338 = vrot.lane.b32.xlu0 %v859, 20
      %v1339 = vpop.permute.xlu0 %1338
      %1340 = vrot.lane.b32.xlu0 %v861, 20
      %v1341 = vpop.permute.xlu0 %1340
      %1342 = vrot.lane.b32.xlu0 %v864, 20
      %v1343 = vpop.permute.xlu0 %1342
      %1344 = vrot.lane.b32.xlu0 %v866, 20
      %v1345 = vpop.permute.xlu0 %1344
      %1346 = vrot.lane.b32.xlu0 %v869, 20
      %v1347 = vpop.permute.xlu0 %1346
      %1348 = vrot.lane.b32.xlu0 %v871, 20
      %v1349 = vpop.permute.xlu0 %1348
      %1350 = vrot.lane.b32.xlu0 %v874, 20
      %v1351 = vpop.permute.xlu0 %1350
      %1352 = vrot.lane.b32.xlu0 %v876, 20
      %v1353 = vpop.permute.xlu0 %1352
      %1354 = vrot.lane.b32.xlu0 %v879, 20
      %v1355 = vpop.permute.xlu0 %1354
      %1356 = vrot.lane.b32.xlu0 %v881, 20
      %v1357 = vpop.permute.xlu0 %1356
      %1358 = vrot.lane.b32.xlu0 %v884, 20
      %v1359 = vpop.permute.xlu0 %1358
      %1360 = vrot.lane.b32.xlu0 %v886, 20
      %v1361 = vpop.permute.xlu0 %1360
      %1362 = vrot.lane.b32.xlu0 %v889, 20
      %v1363 = vpop.permute.xlu0 %1362
      %1364 = vrot.lane.b32.xlu0 %v891, 20
      %v1365 = vpop.permute.xlu0 %1364
      %1366 = vrot.lane.b32.xlu0 %v894, 20
      %v1367 = vpop.permute.xlu0 %1366
      %1368 = vrot.lane.b32.xlu0 %v896, 20
      %v1369 = vpop.permute.xlu0 %1368
      %1370 = vrot.lane.b32.xlu0 %v899, 20
      %v1371 = vpop.permute.xlu0 %1370
      %1372 = vrot.lane.b32.xlu0 %v901, 20
      %v1373 = vpop.permute.xlu0 %1372
      %1374 = vrot.lane.b32.xlu0 %v904, 20
      %v1375 = vpop.permute.xlu0 %1374
      %1376 = vrot.lane.b32.xlu0 %v906, 20
      %v1377 = vpop.permute.xlu0 %1376
      %1378 = vrot.lane.b32.xlu0 %v909, 20
      %v1379 = vpop.permute.xlu0 %1378
      %1380 = vrot.lane.b32.xlu0 %v911, 20
      %v1381 = vpop.permute.xlu0 %1380
      %1382 = vrot.lane.b32.xlu0 %v914, 20
      %v1383 = vpop.permute.xlu0 %1382
      %1384 = vrot.lane.b32.xlu0 %v916, 20
      %v1385 = vpop.permute.xlu0 %1384
      %1386 = vrot.lane.b32.xlu0 %v919, 20
      %v1387 = vpop.permute.xlu0 %1386
      %1388 = vrot.lane.b32.xlu0 %v921, 20
      %v1389 = vpop.permute.xlu0 %1388
      %1390 = vrot.lane.b32.xlu0 %v931, 20
      %v1391 = vpop.permute.xlu0 %1390
      %1392 = vrot.lane.b32.xlu0 %v933, 20
      %v1393 = vpop.permute.xlu0 %1392
      %1426 = vrot.lane.b32.xlu0 %v694, 24
      %v1427 = vpop.permute.xlu0 %1426
      %1428 = vrot.lane.b32.xlu0 %v594, 24
      %v1429 = vpop.permute.xlu0 %1428
      %1430 = vrot.lane.b32.xlu0 %v695, 24
      %v1431 = vpop.permute.xlu0 %1430
      %1432 = vrot.lane.b32.xlu0 %v597, 24
      %v1433 = vpop.permute.xlu0 %1432
      %1434 = vrot.lane.b32.xlu0 %v696, 24
      %v1435 = vpop.permute.xlu0 %1434
      %1436 = vrot.lane.b32.xlu0 %v600, 24
      %v1437 = vpop.permute.xlu0 %1436
      %1438 = vrot.lane.b32.xlu0 %v697, 24
      %v1439 = vpop.permute.xlu0 %1438
      %1440 = vrot.lane.b32.xlu0 %v603, 24
      %v1441 = vpop.permute.xlu0 %1440
      %1442 = vrot.lane.b32.xlu0 %v698, 24
      %v1443 = vpop.permute.xlu0 %1442
      %1444 = vrot.lane.b32.xlu0 %v606, 24
      %v1445 = vpop.permute.xlu0 %1444
      %1446 = vrot.lane.b32.xlu0 %v699, 24
      %v1447 = vpop.permute.xlu0 %1446
      %1448 = vrot.lane.b32.xlu0 %v609, 24
      %v1449 = vpop.permute.xlu0 %1448
      %1450 = vrot.lane.b32.xlu0 %v700, 24
      %v1451 = vpop.permute.xlu0 %1450
      %1452 = vrot.lane.b32.xlu0 %v612, 24
      %v1453 = vpop.permute.xlu0 %1452
      %1454 = vrot.lane.b32.xlu0 %v701, 24
      %v1455 = vpop.permute.xlu0 %1454
      %1456 = vrot.lane.b32.xlu0 %v615, 24
      %v1457 = vpop.permute.xlu0 %1456
      %1458 = vrot.lane.b32.xlu0 %v702, 24
      %v1459 = vpop.permute.xlu0 %1458
      %1460 = vrot.lane.b32.xlu0 %v618, 24
      %v1461 = vpop.permute.xlu0 %1460
      %1462 = vrot.lane.b32.xlu0 %v703, 24
      %v1463 = vpop.permute.xlu0 %1462
      %1464 = vrot.lane.b32.xlu0 %v621, 24
      %v1465 = vpop.permute.xlu0 %1464
      %1466 = vrot.lane.b32.xlu0 %v704, 24
      %v1467 = vpop.permute.xlu0 %1466
      %1468 = vrot.lane.b32.xlu0 %v624, 24
      %v1469 = vpop.permute.xlu0 %1468
      %1470 = vrot.lane.b32.xlu0 %v705, 24
      %v1471 = vpop.permute.xlu0 %1470
      %1472 = vrot.lane.b32.xlu0 %v627, 24
      %v1473 = vpop.permute.xlu0 %1472
      %1474 = vrot.lane.b32.xlu0 %v706, 24
      %v1475 = vpop.permute.xlu0 %1474
      %1476 = vrot.lane.b32.xlu0 %v630, 24
      %v1477 = vpop.permute.xlu0 %1476
      %1478 = vrot.lane.b32.xlu0 %v707, 24
      %v1479 = vpop.permute.xlu0 %1478
      %1480 = vrot.lane.b32.xlu0 %v633, 24
      %v1481 = vpop.permute.xlu0 %1480
      %1482 = vrot.lane.b32.xlu0 %v708, 24
      %v1483 = vpop.permute.xlu0 %1482
      %1484 = vrot.lane.b32.xlu0 %v636, 24
      %v1485 = vpop.permute.xlu0 %1484
      %1486 = vrot.lane.b32.xlu0 %v709, 24
      %v1487 = vpop.permute.xlu0 %1486
      %1488 = vrot.lane.b32.xlu0 %v639, 24
      %v1489 = vpop.permute.xlu0 %1488
      %1522 = vrot.lane.b32.xlu0 %v773, 28
      %v1523 = vpop.permute.xlu0 %1522
      %1524 = vrot.lane.b32.xlu0 %v775, 28
      %v1525 = vpop.permute.xlu0 %1524
      %1526 = vrot.lane.b32.xlu0 %v778, 28
      %v1527 = vpop.permute.xlu0 %1526
      %1528 = vrot.lane.b32.xlu0 %v780, 28
      %v1529 = vpop.permute.xlu0 %1528
      %1530 = vrot.lane.b32.xlu0 %v783, 28
      %v1531 = vpop.permute.xlu0 %1530
      %1532 = vrot.lane.b32.xlu0 %v785, 28
      %v1533 = vpop.permute.xlu0 %1532
      %1534 = vrot.lane.b32.xlu0 %v788, 28
      %v1535 = vpop.permute.xlu0 %1534
      %1536 = vrot.lane.b32.xlu0 %v790, 28
      %v1537 = vpop.permute.xlu0 %1536
      %1538 = vrot.lane.b32.xlu0 %v793, 28
      %v1539 = vpop.permute.xlu0 %1538
      %1540 = vrot.lane.b32.xlu0 %v795, 28
      %v1541 = vpop.permute.xlu0 %1540
      %1542 = vrot.lane.b32.xlu0 %v798, 28
      %v1543 = vpop.permute.xlu0 %1542
      %1544 = vrot.lane.b32.xlu0 %v800, 28
      %v1545 = vpop.permute.xlu0 %1544
      %1546 = vrot.lane.b32.xlu0 %v803, 28
      %v1547 = vpop.permute.xlu0 %1546
      %1548 = vrot.lane.b32.xlu0 %v805, 28
      %v1549 = vpop.permute.xlu0 %1548
      %1550 = vrot.lane.b32.xlu0 %v808, 28
      %v1551 = vpop.permute.xlu0 %1550
      %1552 = vrot.lane.b32.xlu0 %v810, 28
      %v1553 = vpop.permute.xlu0 %1552
      %1554 = vrot.lane.b32.xlu0 %v813, 28
      %v1555 = vpop.permute.xlu0 %1554
      %1556 = vrot.lane.b32.xlu0 %v815, 28
      %v1557 = vpop.permute.xlu0 %1556
      %1558 = vrot.lane.b32.xlu0 %v818, 28
      %v1559 = vpop.permute.xlu0 %1558
      %1560 = vrot.lane.b32.xlu0 %v820, 28
      %v1561 = vpop.permute.xlu0 %1560
      %1562 = vrot.lane.b32.xlu0 %v823, 28
      %v1563 = vpop.permute.xlu0 %1562
      %1564 = vrot.lane.b32.xlu0 %v825, 28
      %v1565 = vpop.permute.xlu0 %1564
      %1566 = vrot.lane.b32.xlu0 %v828, 28
      %v1567 = vpop.permute.xlu0 %1566
      %1568 = vrot.lane.b32.xlu0 %v830, 28
      %v1569 = vpop.permute.xlu0 %1568
      %1570 = vrot.lane.b32.xlu0 %v833, 28
      %v1571 = vpop.permute.xlu0 %1570
      %1572 = vrot.lane.b32.xlu0 %v835, 28
      %v1573 = vpop.permute.xlu0 %1572
      %1574 = vrot.lane.b32.xlu0 %v838, 28
      %v1575 = vpop.permute.xlu0 %1574
      %1576 = vrot.lane.b32.xlu0 %v840, 28
      %v1577 = vpop.permute.xlu0 %1576
      %1578 = vrot.lane.b32.xlu0 %v926, 28
      %v1579 = vpop.permute.xlu0 %1578
      %1580 = vrot.lane.b32.xlu0 %v928, 28
      %v1581 = vpop.permute.xlu0 %1580
      %1582 = vrot.lane.b32.xlu0 %v938, 28
      %v1583 = vpop.permute.xlu0 %1582
      %1584 = vrot.lane.b32.xlu0 %v940, 28
      %v1585 = vpop.permute.xlu0 %1584
      %1618 = vrot.lane.b32.xlu0 %v854, 32
      %v1619 = vpop.permute.xlu0 %1618
      %1620 = vrot.lane.b32.xlu0 %v856, 32
      %v1621 = vpop.permute.xlu0 %1620
      %1622 = vrot.lane.b32.xlu0 %v859, 32
      %v1623 = vpop.permute.xlu0 %1622
      %1624 = vrot.lane.b32.xlu0 %v861, 32
      %v1625 = vpop.permute.xlu0 %1624
      %1626 = vrot.lane.b32.xlu0 %v864, 32
      %v1627 = vpop.permute.xlu0 %1626
      %1628 = vrot.lane.b32.xlu0 %v866, 32
      %v1629 = vpop.permute.xlu0 %1628
      %1630 = vrot.lane.b32.xlu0 %v869, 32
      %v1631 = vpop.permute.xlu0 %1630
      %1632 = vrot.lane.b32.xlu0 %v871, 32
      %v1633 = vpop.permute.xlu0 %1632
      %1634 = vrot.lane.b32.xlu0 %v874, 32
      %v1635 = vpop.permute.xlu0 %1634
      %1636 = vrot.lane.b32.xlu0 %v876, 32
      %v1637 = vpop.permute.xlu0 %1636
      %1638 = vrot.lane.b32.xlu0 %v879, 32
      %v1639 = vpop.permute.xlu0 %1638
      %1640 = vrot.lane.b32.xlu0 %v881, 32
      %v1641 = vpop.permute.xlu0 %1640
      %1642 = vrot.lane.b32.xlu0 %v884, 32
      %v1643 = vpop.permute.xlu0 %1642
      %1644 = vrot.lane.b32.xlu0 %v886, 32
      %v1645 = vpop.permute.xlu0 %1644
      %1646 = vrot.lane.b32.xlu0 %v889, 32
      %v1647 = vpop.permute.xlu0 %1646
      %1648 = vrot.lane.b32.xlu0 %v891, 32
      %v1649 = vpop.permute.xlu0 %1648
      %1650 = vrot.lane.b32.xlu0 %v894, 32
      %v1651 = vpop.permute.xlu0 %1650
      %1652 = vrot.lane.b32.xlu0 %v896, 32
      %v1653 = vpop.permute.xlu0 %1652
      %1654 = vrot.lane.b32.xlu0 %v899, 32
      %v1655 = vpop.permute.xlu0 %1654
      %1656 = vrot.lane.b32.xlu0 %v901, 32
      %v1657 = vpop.permute.xlu0 %1656
      %1658 = vrot.lane.b32.xlu0 %v904, 32
      %v1659 = vpop.permute.xlu0 %1658
      %1660 = vrot.lane.b32.xlu0 %v906, 32
      %v1661 = vpop.permute.xlu0 %1660
      %1662 = vrot.lane.b32.xlu0 %v909, 32
      %v1663 = vpop.permute.xlu0 %1662
      %1664 = vrot.lane.b32.xlu0 %v911, 32
      %v1665 = vpop.permute.xlu0 %1664
      %1666 = vrot.lane.b32.xlu0 %v914, 32
      %v1667 = vpop.permute.xlu0 %1666
      %1668 = vrot.lane.b32.xlu0 %v916, 32
      %v1669 = vpop.permute.xlu0 %1668
      %1670 = vrot.lane.b32.xlu0 %v919, 32
      %v1671 = vpop.permute.xlu0 %1670
      %1672 = vrot.lane.b32.xlu0 %v921, 32
      %v1673 = vpop.permute.xlu0 %1672
      %1674 = vrot.lane.b32.xlu0 %v931, 32
      %v1675 = vpop.permute.xlu0 %1674
      %1676 = vrot.lane.b32.xlu0 %v933, 32
      %v1677 = vpop.permute.xlu0 %1676
      %1678 = vrot.lane.b32.xlu0 %v943, 32
      %v1679 = vpop.permute.xlu0 %1678
      %1680 = vrot.lane.b32.xlu0 %v945, 32
      %v1681 = vpop.permute.xlu0 %1680
      %vm1714 = vcmask 31744
      %v1715 = vsel %vm1714, %v692, %v947
      %v1716 = vsel %vm1714, %v588, %v949
      %v1717 = vsel %vm1714, %v693, %v951
      %v1718 = vsel %vm1714, %v591, %v953
      %v1719 = vsel %vm1714, %v694, %v955
      %v1720 = vsel %vm1714, %v594, %v957
      %v1721 = vsel %vm1714, %v695, %v959
      %v1722 = vsel %vm1714, %v597, %v961
      %v1723 = vsel %vm1714, %v696, %v963
      %v1724 = vsel %vm1714, %v600, %v965
      %v1725 = vsel %vm1714, %v697, %v967
      %v1726 = vsel %vm1714, %v603, %v969
      %v1727 = vsel %vm1714, %v698, %v971
      %v1728 = vsel %vm1714, %v606, %v973
      %v1729 = vsel %vm1714, %v699, %v975
      %v1730 = vsel %vm1714, %v609, %v977
      %v1731 = vsel %vm1714, %v700, %v979
      %v1732 = vsel %vm1714, %v612, %v981
      %v1733 = vsel %vm1714, %v701, %v983
      %v1734 = vsel %vm1714, %v615, %v985
      %v1735 = vsel %vm1714, %v702, %v987
      %v1736 = vsel %vm1714, %v618, %v989
      %v1737 = vsel %vm1714, %v703, %v991
      %v1738 = vsel %vm1714, %v621, %v993
      %v1739 = vsel %vm1714, %v704, %v995
      %v1740 = vsel %vm1714, %v624, %v997
      %v1741 = vsel %vm1714, %v705, %v999
      %v1742 = vsel %vm1714, %v627, %v1001
      %v1743 = vsel %vm1714, %v706, %v1003
      %v1744 = vsel %vm1714, %v630, %v1005
      %v1745 = vsel %vm1714, %v707, %v1007
      %v1746 = vsel %vm1714, %v633, %v1009
      %vm1747 = vcmask 64512
      %v1748 = vsel %vm1747, %v1715, %v1043
      %v1749 = vsel %vm1747, %v1716, %v1045
      %v1750 = vsel %vm1747, %v1717, %v1047
      %v1751 = vsel %vm1747, %v1718, %v1049
      %v1752 = vsel %vm1747, %v1719, %v1051
      %v1753 = vsel %vm1747, %v1720, %v1053
      %v1754 = vsel %vm1747, %v1721, %v1055
      %v1755 = vsel %vm1747, %v1722, %v1057
      %v1756 = vsel %vm1747, %v1723, %v1059
      %v1757 = vsel %vm1747, %v1724, %v1061
      %v1758 = vsel %vm1747, %v1725, %v1063
      %v1759 = vsel %vm1747, %v1726, %v1065
      %v1760 = vsel %vm1747, %v1727, %v1067
      %v1761 = vsel %vm1747, %v1728, %v1069
      %v1762 = vsel %vm1747, %v1729, %v1071
      %v1763 = vsel %vm1747, %v1730, %v1073
      %v1764 = vsel %vm1747, %v1731, %v1075
      %v1765 = vsel %vm1747, %v1732, %v1077
      %v1766 = vsel %vm1747, %v1733, %v1079
      %v1767 = vsel %vm1747, %v1734, %v1081
      %v1768 = vsel %vm1747, %v1735, %v1083
      %v1769 = vsel %vm1747, %v1736, %v1085
      %v1770 = vsel %vm1747, %v1737, %v1087
      %v1771 = vsel %vm1747, %v1738, %v1089
      %v1772 = vsel %vm1747, %v1739, %v1091
      %v1773 = vsel %vm1747, %v1740, %v1093
      %v1774 = vsel %vm1747, %v1741, %v1095
      %v1775 = vsel %vm1747, %v1742, %v1097
      %v1776 = vsel %vm1747, %v1743, %v1099
      %v1777 = vsel %vm1747, %v1744, %v1101
      %v1778 = vsel %vm1747, %v1745, %v1103
      %v1779 = vsel %vm1747, %v1746, %v1105
      %vm1780 = vcmask 97280
      %v1781 = vsel %vm1780, %v1748, %v1139
      %v1782 = vsel %vm1780, %v1749, %v1141
      %v1783 = vsel %vm1780, %v1750, %v1143
      %v1784 = vsel %vm1780, %v1751, %v1145
      %v1785 = vsel %vm1780, %v1752, %v1147
      %v1786 = vsel %vm1780, %v1753, %v1149
      %v1787 = vsel %vm1780, %v1754, %v1151
      %v1788 = vsel %vm1780, %v1755, %v1153
      %v1789 = vsel %vm1780, %v1756, %v1155
      %v1790 = vsel %vm1780, %v1757, %v1157
      %v1791 = vsel %vm1780, %v1758, %v1159
      %v1792 = vsel %vm1780, %v1759, %v1161
      %v1793 = vsel %vm1780, %v1760, %v1163
      %v1794 = vsel %vm1780, %v1761, %v1165
      %v1795 = vsel %vm1780, %v1762, %v1167
      %v1796 = vsel %vm1780, %v1763, %v1169
      %v1797 = vsel %vm1780, %v1764, %v1171
      %v1798 = vsel %vm1780, %v1765, %v1173
      %v1799 = vsel %vm1780, %v1766, %v1175
      %v1800 = vsel %vm1780, %v1767, %v1177
      %v1801 = vsel %vm1780, %v1768, %v1179
      %v1802 = vsel %vm1780, %v1769, %v1181
      %v1803 = vsel %vm1780, %v1770, %v1183
      %v1804 = vsel %vm1780, %v1771, %v1185
      %v1805 = vsel %vm1780, %v1772, %v1187
      %v1806 = vsel %vm1780, %v1773, %v1189
      %v1807 = vsel %vm1780, %v1774, %v1191
      %v1808 = vsel %vm1780, %v1775, %v1193
      %v1809 = vsel %vm1780, %v1776, %v1195
      %v1810 = vsel %vm1780, %v1777, %v1197
      %v1811 = vsel %vm1780, %v1778, %v1199
      %v1812 = vsel %vm1780, %v1779, %v1201
      %vm1813 = vcmask 130048
      %v1814 = vsel %vm1813, %v1781, %v1235
      %v1815 = vsel %vm1813, %v1782, %v1237
      %v1816 = vsel %vm1813, %v1783, %v1239
      %v1817 = vsel %vm1813, %v1784, %v1241
      %v1818 = vsel %vm1813, %v1785, %v1243
      %v1819 = vsel %vm1813, %v1786, %v1245
      %v1820 = vsel %vm1813, %v1787, %v1247
      %v1821 = vsel %vm1813, %v1788, %v1249
      %v1822 = vsel %vm1813, %v1789, %v1251
      %v1823 = vsel %vm1813, %v1790, %v1253
      %v1824 = vsel %vm1813, %v1791, %v1255
      %v1825 = vsel %vm1813, %v1792, %v1257
      %v1826 = vsel %vm1813, %v1793, %v1259
      %v1827 = vsel %vm1813, %v1794, %v1261
      %v1828 = vsel %vm1813, %v1795, %v1263
      %v1829 = vsel %vm1813, %v1796, %v1265
      %v1830 = vsel %vm1813, %v1797, %v1267
      %v1831 = vsel %vm1813, %v1798, %v1269
      %v1832 = vsel %vm1813, %v1799, %v1271
      %v1833 = vsel %vm1813, %v1800, %v1273
      %v1834 = vsel %vm1813, %v1801, %v1275
      %v1835 = vsel %vm1813, %v1802, %v1277
      %v1836 = vsel %vm1813, %v1803, %v1279
      %v1837 = vsel %vm1813, %v1804, %v1281
      %v1838 = vsel %vm1813, %v1805, %v1283
      %v1839 = vsel %vm1813, %v1806, %v1285
      %v1840 = vsel %vm1813, %v1807, %v1287
      %v1841 = vsel %vm1813, %v1808, %v1289
      %v1842 = vsel %vm1813, %v1809, %v1291
      %v1843 = vsel %vm1813, %v1810, %v1293
      %v1844 = vsel %vm1813, %v1811, %v1295
      %v1845 = vsel %vm1813, %v1812, %v1297
      %vm1846 = vcmask 162816
      %v1847 = vsel %vm1846, %v1814, %v1331
      %v1848 = vsel %vm1846, %v1815, %v1333
      %v1849 = vsel %vm1846, %v1816, %v1335
      %v1850 = vsel %vm1846, %v1817, %v1337
      %v1851 = vsel %vm1846, %v1818, %v1339
      %v1852 = vsel %vm1846, %v1819, %v1341
      %v1853 = vsel %vm1846, %v1820, %v1343
      %v1854 = vsel %vm1846, %v1821, %v1345
      %v1855 = vsel %vm1846, %v1822, %v1347
      %v1856 = vsel %vm1846, %v1823, %v1349
      %v1857 = vsel %vm1846, %v1824, %v1351
      %v1858 = vsel %vm1846, %v1825, %v1353
      %v1859 = vsel %vm1846, %v1826, %v1355
      %v1860 = vsel %vm1846, %v1827, %v1357
      %v1861 = vsel %vm1846, %v1828, %v1359
      %v1862 = vsel %vm1846, %v1829, %v1361
      %v1863 = vsel %vm1846, %v1830, %v1363
      %v1864 = vsel %vm1846, %v1831, %v1365
      %v1865 = vsel %vm1846, %v1832, %v1367
      %v1866 = vsel %vm1846, %v1833, %v1369
      %v1867 = vsel %vm1846, %v1834, %v1371
      %v1868 = vsel %vm1846, %v1835, %v1373
      %v1869 = vsel %vm1846, %v1836, %v1375
      %v1870 = vsel %vm1846, %v1837, %v1377
      %v1871 = vsel %vm1846, %v1838, %v1379
      %v1872 = vsel %vm1846, %v1839, %v1381
      %v1873 = vsel %vm1846, %v1840, %v1383
      %v1874 = vsel %vm1846, %v1841, %v1385
      %v1875 = vsel %vm1846, %v1842, %v1387
      %v1876 = vsel %vm1846, %v1843, %v1389
      %v1877 = vsel %vm1846, %v1844, %v1391
      %v1878 = vsel %vm1846, %v1845, %v1393
      %vm1879 = vcmask 195584
      %v1880 = vsel %vm1879, %v1847, %v1427
      %v1881 = vsel %vm1879, %v1848, %v1429
      %v1882 = vsel %vm1879, %v1849, %v1431
      %v1883 = vsel %vm1879, %v1850, %v1433
      %v1884 = vsel %vm1879, %v1851, %v1435
      %v1885 = vsel %vm1879, %v1852, %v1437
      %v1886 = vsel %vm1879, %v1853, %v1439
      %v1887 = vsel %vm1879, %v1854, %v1441
      %v1888 = vsel %vm1879, %v1855, %v1443
      %v1889 = vsel %vm1879, %v1856, %v1445
      %v1890 = vsel %vm1879, %v1857, %v1447
      %v1891 = vsel %vm1879, %v1858, %v1449
      %v1892 = vsel %vm1879, %v1859, %v1451
      %v1893 = vsel %vm1879, %v1860, %v1453
      %v1894 = vsel %vm1879, %v1861, %v1455
      %v1895 = vsel %vm1879, %v1862, %v1457
      %v1896 = vsel %vm1879, %v1863, %v1459
      %v1897 = vsel %vm1879, %v1864, %v1461
      %v1898 = vsel %vm1879, %v1865, %v1463
      %v1899 = vsel %vm1879, %v1866, %v1465
      %v1900 = vsel %vm1879, %v1867, %v1467
      %v1901 = vsel %vm1879, %v1868, %v1469
      %v1902 = vsel %vm1879, %v1869, %v1471
      %v1903 = vsel %vm1879, %v1870, %v1473
      %v1904 = vsel %vm1879, %v1871, %v1475
      %v1905 = vsel %vm1879, %v1872, %v1477
      %v1906 = vsel %vm1879, %v1873, %v1479
      %v1907 = vsel %vm1879, %v1874, %v1481
      %v1908 = vsel %vm1879, %v1875, %v1483
      %v1909 = vsel %vm1879, %v1876, %v1485
      %v1910 = vsel %vm1879, %v1877, %v1487
      %v1911 = vsel %vm1879, %v1878, %v1489
      %vm1912 = vcmask 228352
      %v1913 = vsel %vm1912, %v1880, %v1523
      %v1914 = vsel %vm1912, %v1881, %v1525
      %v1915 = vsel %vm1912, %v1882, %v1527
      %v1916 = vsel %vm1912, %v1883, %v1529
      %v1917 = vsel %vm1912, %v1884, %v1531
      %v1918 = vsel %vm1912, %v1885, %v1533
      %v1919 = vsel %vm1912, %v1886, %v1535
      %v1920 = vsel %vm1912, %v1887, %v1537
      %v1921 = vsel %vm1912, %v1888, %v1539
      %v1922 = vsel %vm1912, %v1889, %v1541
      %v1923 = vsel %vm1912, %v1890, %v1543
      %v1924 = vsel %vm1912, %v1891, %v1545
      %v1925 = vsel %vm1912, %v1892, %v1547
      %v1926 = vsel %vm1912, %v1893, %v1549
      %v1927 = vsel %vm1912, %v1894, %v1551
      %v1928 = vsel %vm1912, %v1895, %v1553
      %v1929 = vsel %vm1912, %v1896, %v1555
      %v1930 = vsel %vm1912, %v1897, %v1557
      %v1931 = vsel %vm1912, %v1898, %v1559
      %v1932 = vsel %vm1912, %v1899, %v1561
      %v1933 = vsel %vm1912, %v1900, %v1563
      %v1934 = vsel %vm1912, %v1901, %v1565
      %v1935 = vsel %vm1912, %v1902, %v1567
      %v1936 = vsel %vm1912, %v1903, %v1569
      %v1937 = vsel %vm1912, %v1904, %v1571
      %v1938 = vsel %vm1912, %v1905, %v1573
      %v1939 = vsel %vm1912, %v1906, %v1575
      %v1940 = vsel %vm1912, %v1907, %v1577
      %v1941 = vsel %vm1912, %v1908, %v1579
      %v1942 = vsel %vm1912, %v1909, %v1581
      %v1943 = vsel %vm1912, %v1910, %v1583
      %v1944 = vsel %vm1912, %v1911, %v1585
      %vm1945 = vcmask 261120
      %v1946 = vsel %vm1945, %v1913, %v1619
      %v1947 = vsel %vm1945, %v1914, %v1621
      %v1948 = vsel %vm1945, %v1915, %v1623
      %v1949 = vsel %vm1945, %v1916, %v1625
      %v1950 = vsel %vm1945, %v1917, %v1627
      %v1951 = vsel %vm1945, %v1918, %v1629
      %v1952 = vsel %vm1945, %v1919, %v1631
      %v1953 = vsel %vm1945, %v1920, %v1633
      %v1954 = vsel %vm1945, %v1921, %v1635
      %v1955 = vsel %vm1945, %v1922, %v1637
      %v1956 = vsel %vm1945, %v1923, %v1639
      %v1957 = vsel %vm1945, %v1924, %v1641
      %v1958 = vsel %vm1945, %v1925, %v1643
      %v1959 = vsel %vm1945, %v1926, %v1645
      %v1960 = vsel %vm1945, %v1927, %v1647
      %v1961 = vsel %vm1945, %v1928, %v1649
      %v1962 = vsel %vm1945, %v1929, %v1651
      %v1963 = vsel %vm1945, %v1930, %v1653
      %v1964 = vsel %vm1945, %v1931, %v1655
      %v1965 = vsel %vm1945, %v1932, %v1657
      %v1966 = vsel %vm1945, %v1933, %v1659
      %v1967 = vsel %vm1945, %v1934, %v1661
      %v1968 = vsel %vm1945, %v1935, %v1663
      %v1969 = vsel %vm1945, %v1936, %v1665
      %v1970 = vsel %vm1945, %v1937, %v1667
      %v1971 = vsel %vm1945, %v1938, %v1669
      %v1972 = vsel %vm1945, %v1939, %v1671
      %v1973 = vsel %vm1945, %v1940, %v1673
      %v1974 = vsel %vm1945, %v1941, %v1675
      %v1975 = vsel %vm1945, %v1942, %v1677
      %v1976 = vsel %vm1945, %v1943, %v1679
      %v1977 = vsel %vm1945, %v1944, %v1681
      %v1978 = vpack.c.bf16 %v1947, %v1946
      %v1979 = vpack.c.bf16 %v1949, %v1948
      %v1980 = vpack.c.bf16 %v1951, %v1950
      %v1981 = vpack.c.bf16 %v1953, %v1952
      %v1982 = vpack.c.bf16 %v1955, %v1954
      %v1983 = vpack.c.bf16 %v1957, %v1956
      %v1984 = vpack.c.bf16 %v1959, %v1958
      %v1985 = vpack.c.bf16 %v1961, %v1960
      %v1986 = vpack.c.bf16 %v1963, %v1962
      %v1987 = vpack.c.bf16 %v1965, %v1964
      %v1988 = vpack.c.bf16 %v1967, %v1966
      %v1989 = vpack.c.bf16 %v1969, %v1968
      %v1990 = vpack.c.bf16 %v1971, %v1970
      %v1991 = vpack.c.bf16 %v1973, %v1972
      %v1992 = vpack.c.bf16 %v1975, %v1974
      %v1993 = vpack.c.bf16 %v1977, %v1976
      %v1994 = vld [vmem:[%s3] sm:$0xf]
      %v1995 = vld [vmem:[%s3 + $0x4] sm:$0xf]
      %v1996 = vld [vmem:[%s3 + $0x8] sm:$0xf]
      %v1997 = vld [vmem:[%s3 + $0xc] sm:$0xf]
      %v1998 = vld [vmem:[%s3 + $0x10] sm:$0x3]
      %v1999 = vld [vmem:[%s4] sm:$0x1]
      %v2001 = vperm.slane %v1999, 0
      %v2008 = vunpack.c.l.b16 %v1994
      %v2009 = vunpack.c.l.b16 %v1995
      %v2010 = vunpack.c.l.b16 %v1996
      %v2011 = vunpack.c.l.b16 %v1997
      %v2012 = vunpack.c.l.b16 %v1998
      %v2013 = vpack.c.b16 %v2009, %v2008
      %v2014 = vpack.c.b16 %v2011, %v2010
      %v2015 = vpack.c.b16 %v2012, %v2012
      %vm2018 = vcmask 293888
      %v2020 = vsel %vm2018, %v1978, 0
      %v2023 = vsel %vm2018, %v1979, 0
      %v2026 = vsel %vm2018, %v1980, 0
      %v2029 = vsel %vm2018, %v1981, 0
      %v2032 = vsel %vm2018, %v1982, 0
      %v2035 = vsel %vm2018, %v1983, 0
      %v2038 = vsel %vm2018, %v1984, 0
      %v2041 = vsel %vm2018, %v1985, 0
      %v2044 = vsel %vm2018, %v1986, 0
      %v2047 = vsel %vm2018, %v1987, 0
      %v2050 = vsel %vm2018, %v1988, 0
      %v2053 = vsel %vm2018, %v1989, 0
      %v2056 = vsel %vm2018, %v1990, 0
      %v2059 = vsel %vm2018, %v1991, 0
      %v2062 = vsel %vm2018, %v1992, 0
      %v2065 = vsel %vm2018, %v1993, 0
      %vm2067 = vcmask 1041408
      %v2069 = vsel %vm2067, %v2015, 0
      %2071 = vmatpush.bf16.msra.mxu0 0
      %2072 = vmatpush.bf16.msra.mxu0 0
      %2073 = vmatpush.bf16.msra.mxu0 0
      %2074 = vmatpush.bf16.msra.mxu0 0
      %2075 = vmatpush.bf16.msra.mxu0 0
      %2076 = vmatpush.bf16.msra.mxu0 %v2069
      %2077 = vmatpush.bf16.msra.mxu0 %v2014
      %2078 = vmatpush.bf16.msra.mxu0 %v2013
      %2079 = vmatmul.bf16.gmra.mxu0 %v2020
      %v2080 = vpop.f32.mrf.mxu0
      %v2081 = vadd.f32 %v2001, %v2080
      %v2082 = vpop.f32.mrf.mxu0
      %v2083 = vadd.f32 %v2001, %v2082
      %2084 = vmatmul.bf16.gmra.mxu0 %v2023
      %v2085 = vpop.f32.mrf.mxu0
      %v2086 = vadd.f32 %v2001, %v2085
      %v2087 = vpop.f32.mrf.mxu0
      %v2088 = vadd.f32 %v2001, %v2087
      %2089 = vmatmul.bf16.gmra.mxu0 %v2026
      %v2090 = vpop.f32.mrf.mxu0
      %v2091 = vadd.f32 %v2001, %v2090
      %v2092 = vpop.f32.mrf.mxu0
      %v2093 = vadd.f32 %v2001, %v2092
      %2094 = vmatmul.bf16.gmra.mxu0 %v2029
      %v2095 = vpop.f32.mrf.mxu0
      %v2096 = vadd.f32 %v2001, %v2095
      %v2097 = vpop.f32.mrf.mxu0
      %v2098 = vadd.f32 %v2001, %v2097
      %2099 = vmatmul.bf16.gmra.mxu0 %v2032
      %v2100 = vpop.f32.mrf.mxu0
      %v2101 = vadd.f32 %v2001, %v2100
      %v2102 = vpop.f32.mrf.mxu0
      %v2103 = vadd.f32 %v2001, %v2102
      %2104 = vmatmul.bf16.gmra.mxu0 %v2035
      %v2105 = vpop.f32.mrf.mxu0
      %v2106 = vadd.f32 %v2001, %v2105
      %v2107 = vpop.f32.mrf.mxu0
      %v2108 = vadd.f32 %v2001, %v2107
      %2109 = vmatmul.bf16.gmra.mxu0 %v2038
      %v2110 = vpop.f32.mrf.mxu0
      %v2111 = vadd.f32 %v2001, %v2110
      %v2112 = vpop.f32.mrf.mxu0
      %v2113 = vadd.f32 %v2001, %v2112
      %2114 = vmatmul.bf16.gmra.mxu0 %v2041
      %v2115 = vpop.f32.mrf.mxu0
      %v2116 = vadd.f32 %v2001, %v2115
      %v2117 = vpop.f32.mrf.mxu0
      %v2118 = vadd.f32 %v2001, %v2117
      %2119 = vmatmul.bf16.gmra.mxu0 %v2044
      %v2120 = vpop.f32.mrf.mxu0
      %v2121 = vadd.f32 %v2001, %v2120
      %v2122 = vpop.f32.mrf.mxu0
      %v2123 = vadd.f32 %v2001, %v2122
      %2124 = vmatmul.bf16.gmra.mxu0 %v2047
      %v2125 = vpop.f32.mrf.mxu0
      %v2126 = vadd.f32 %v2001, %v2125
      %v2127 = vpop.f32.mrf.mxu0
      %v2128 = vadd.f32 %v2001, %v2127
      %2129 = vmatmul.bf16.gmra.mxu0 %v2050
      %v2130 = vpop.f32.mrf.mxu0
      %v2131 = vadd.f32 %v2001, %v2130
      %v2132 = vpop.f32.mrf.mxu0
      %v2133 = vadd.f32 %v2001, %v2132
      %2134 = vmatmul.bf16.gmra.mxu0 %v2053
      %v2135 = vpop.f32.mrf.mxu0
      %v2136 = vadd.f32 %v2001, %v2135
      %v2137 = vpop.f32.mrf.mxu0
      %v2138 = vadd.f32 %v2001, %v2137
      %2139 = vmatmul.bf16.gmra.mxu0 %v2056
      %v2140 = vpop.f32.mrf.mxu0
      %v2141 = vadd.f32 %v2001, %v2140
      %v2142 = vpop.f32.mrf.mxu0
      %v2143 = vadd.f32 %v2001, %v2142
      %2144 = vmatmul.bf16.gmra.mxu0 %v2059
      %v2145 = vpop.f32.mrf.mxu0
      %v2146 = vadd.f32 %v2001, %v2145
      %v2147 = vpop.f32.mrf.mxu0
      %v2148 = vadd.f32 %v2001, %v2147
      %2149 = vmatmul.bf16.gmra.mxu0 %v2062
      %v2150 = vpop.f32.mrf.mxu0
      %v2151 = vadd.f32 %v2001, %v2150
      %v2152 = vpop.f32.mrf.mxu0
      %v2153 = vadd.f32 %v2001, %v2152
      %2154 = vmatmul.bf16.gmra.mxu0 %v2065
      %v2155 = vpop.f32.mrf.mxu0
      %v2156 = vadd.f32 %v2001, %v2155
      %v2157 = vpop.f32.mrf.mxu0
      %v2158 = vadd.f32 %v2001, %v2157
      %2159 = vdwg.mxu0
      %2160 = vst.msk [vmem:[%s246] sm:$0xff] %vm1747, %v2081
      %2161 = vst.msk [vmem:[%s246 + $0x8] sm:$0xff] %vm1747, %v2083
      %2162 = vst.msk [vmem:[%s246 + $0x10] sm:$0xff] %vm1747, %v2086
      %2163 = vst.msk [vmem:[%s246 + $0x18] sm:$0xff] %vm1747, %v2088
      %2164 = vst.msk [vmem:[%s246 + $0x20] sm:$0xff] %vm1747, %v2091
      %2165 = vst.msk [vmem:[%s246 + $0x28] sm:$0xff] %vm1747, %v2093
      %2166 = vst.msk [vmem:[%s246 + $0x30] sm:$0xff] %vm1747, %v2096
      %2167 = vst.msk [vmem:[%s246 + $0x38] sm:$0xff] %vm1747, %v2098
      %2168 = vst.msk [vmem:[%s246 + $0x40] sm:$0xff] %vm1747, %v2101
      %2169 = vst.msk [vmem:[%s246 + $0x48] sm:$0xff] %vm1747, %v2103
      %2170 = vst.msk [vmem:[%s246 + $0x50] sm:$0xff] %vm1747, %v2106
      %2171 = vst.msk [vmem:[%s246 + $0x58] sm:$0xff] %vm1747, %v2108
      %2172 = vst.msk [vmem:[%s246 + $0x60] sm:$0xff] %vm1747, %v2111
      %2173 = vst.msk [vmem:[%s246 + $0x68] sm:$0xff] %vm1747, %v2113
      %2174 = vst.msk [vmem:[%s246 + $0x70] sm:$0xff] %vm1747, %v2116
      %2175 = vst.msk [vmem:[%s246 + $0x78] sm:$0xff] %vm1747, %v2118
      %2176 = vst.msk [vmem:[%s246 + $0x80] sm:$0xff] %vm1747, %v2121
      %2177 = vst.msk [vmem:[%s246 + $0x88] sm:$0xff] %vm1747, %v2123
      %2178 = vst.msk [vmem:[%s246 + $0x90] sm:$0xff] %vm1747, %v2126
      %2179 = vst.msk [vmem:[%s246 + $0x98] sm:$0xff] %vm1747, %v2128
      %2180 = vst.msk [vmem:[%s246 + $0xa0] sm:$0xff] %vm1747, %v2131
      %2181 = vst.msk [vmem:[%s246 + $0xa8] sm:$0xff] %vm1747, %v2133
      %2182 = vst.msk [vmem:[%s246 + $0xb0] sm:$0xff] %vm1747, %v2136
      %2183 = vst.msk [vmem:[%s246 + $0xb8] sm:$0xff] %vm1747, %v2138
      %2184 = vst.msk [vmem:[%s246 + $0xc0] sm:$0xff] %vm1747, %v2141
      %2185 = vst.msk [vmem:[%s246 + $0xc8] sm:$0xff] %vm1747, %v2143
      %2186 = vst.msk [vmem:[%s246 + $0xd0] sm:$0xff] %vm1747, %v2146
      %2187 = vst.msk [vmem:[%s246 + $0xd8] sm:$0xff] %vm1747, %v2148
      %2188 = vst.msk [vmem:[%s246 + $0xe0] sm:$0xff] %vm1747, %v2151
      %2189 = vst.msk [vmem:[%s246 + $0xe8] sm:$0xff] %vm1747, %v2153
      %2190 = vst.msk [vmem:[%s246 + $0xf0] sm:$0xff] %vm1747, %v2156
      %2191 = vst.msk [vmem:[%s246 + $0xf8] sm:$0xff] %vm1747, %v2158
      %s2192 = smul.u32 32, %s21
      %p2193 = scmp.lt.s32.totalorder %s20, 1
      %s2194 = scalar_select %p2193, %s20, 1
      %p2195 = scmp.lt.s32.totalorder %s2192, 31
      %s2196 = scalar_select %p2195, %s2192, 31
      %s2197 = smul.addr %s2194, 32
      %s2198 = sadd.s32 %s2196, %s2197
      %s2199 = smul.addr %s2198, 8
      %s2200 = scalar_lea.vmem %s5, %s2199
      // Predicated region
      $region41: #{tpu_custom_call.1} parent=39 // pred_check
        %p2201 = pneg %p158
      $region42: #{tpu_custom_call.1} parent=39 // pred_check_branch
        %2203 = sbr.rel (%p2201) target = $region44
      $region43: #{tpu_custom_call.1} parent=39 // pred_region
        %s2204 = smul.u32 32, %s21
      $region44: #{tpu_custom_call.1} parent=39 // pred_fallthru
        _
    $region40: #{tpu_custom_call.1} parent=5 // pred_fallthru
      _
    %p2205 = scmp.le.s32.totalorder 2, %s11
    // Predicated region
    $region45: #{tpu_custom_call.1} parent=5 // pred_check
      %p2206 = pneg %p2205
    $region46: #{tpu_custom_call.1} parent=5 // pred_check_branch
      %2208 = sbr.rel (%p2206) target = $region48
    $region47: #{tpu_custom_call.1} parent=5 // pred_region
      %s2209 = ssub.s32 %s11, 2
      // Predicated region
      $region49: #{tpu_custom_call.1} parent=47 // pred_check
        %p2210 = pneg %p164
      $region50: #{tpu_custom_call.1} parent=47 // pred_check_branch
        %2212 = sbr.rel (%p2210) target = $region52
      $region51: #{tpu_custom_call.1} parent=47 // pred_region
        %s2213 = smul.u32 32, %s23
        %p2214 = scmp.lt.s32.totalorder %s22, 1
        %s2215 = scalar_select %p2214, %s22, 1
        %p2216 = scmp.lt.s32.totalorder %s2213, 31
        %s2217 = scalar_select %p2216, %s2213, 31
        %s2218 = smul.addr %s2215, 32
        %s2219 = sadd.s32 %s2217, %s2218
        %s2220 = smul.addr %s2219, 8
        %s2221 = scalar_lea.vmem %s5, %s2220
      $region52: #{tpu_custom_call.1} parent=47 // pred_fallthru
        _
    $region48: #{tpu_custom_call.1} parent=5 // pred_fallthru
      _
  $region6: #{tpu_custom_call.1} parent=0 // loop_footer
    %s15 = sadd.s32 1, %s11
  $region7: #{tpu_custom_call.1} parent=0 // loop_footer_branch
    %10 = sbr.rel target = $region3
  $region8: #{tpu_custom_call.1} parent=0 // loop_exit
    _

</llo_original>
